<compile_context>
chip_gen: v7x
topology: tpu7x:2x2x1
jax: 0.10.0
libtpu: 0.0.40
codegen_flags: <defaults>
</compile_context>

<pallas_src>
import functools

import numpy as np
import jax
import jax.numpy as jnp
from jax import lax
from jax.experimental import pallas as pl
from jax.experimental.pallas import tpu as pltpu


# ----------------------------- fused Pallas kernel ---------------------------

def _netd_gan_loss_kernel(stage_w_ref, base_loss_ref, x_ref,
                          w1a_ref, w1b_ref, w1c_ref, w1d_ref, b1_ref,
                          w2_ref, b2_ref, w3_ref, b3_ref, w4_ref, b4_ref,
                          cum_ref, gtot_ref, loss_ref, *,
                          batch, num_stages, neg_slope, x_win_stride):
    """Fused netD forward (banded conv1 + 3 Toeplitz layers) + per-stage
    BCEWithLogitsLoss(target=real) means + the whole GAN-loss scalar epilogue.

    x_ref:   (M_pad, 1152) bf16 - h-major, zero h-padded, stage-stacked inputs
    w1*_ref: (384, 128) bf16    - exact band blocks of layer-1's Toeplitz
    w2..w4:  small dense Toeplitz weights (bf16), biases f32 (1, N)
    outputs: SMEM f32 - cumulative weighted GAN loss per stage, G_total, new loss
    """

    def lrelu(z):
        return jnp.where(z >= 0.0, z, z * neg_slope)

    # ---- layer 1: 4 banded matmuls over output-row pairs (all lane-aligned) --
    zs = []
    for t, w_ref in enumerate((w1a_ref, w1b_ref, w1c_ref, w1d_ref)):
        kwin = w_ref.shape[0]
        c0 = t * x_win_stride
        xt = x_ref[:, c0:c0 + kwin]                              # (M, 384) bf16
        zs.append(jnp.dot(xt, w_ref[...],
                          preferred_element_type=jnp.float32))   # (M, 128) f32
    a1 = lrelu(jnp.concatenate(zs, axis=-1) + b1_ref[...])       # (M, 512) f32
    a1 = a1.astype(jnp.bfloat16)

    # ---- layers 2-4: small Toeplitz matmuls, f32 epilogue --------------------
    a2 = lrelu(jnp.dot(a1, w2_ref[...],
                       preferred_element_type=jnp.float32) + b2_ref[...])
    a2 = a2.astype(jnp.bfloat16)                                 # (M, 256)
    a3 = lrelu(jnp.dot(a2, w3_ref[...],
                       preferred_element_type=jnp.float32) + b3_ref[...])
    a3 = a3.astype(jnp.bfloat16)                                 # (M, 256) lane-aligned
    logits = jnp.dot(a3, w4_ref[...],
                     preferred_element_type=jnp.float32) + b4_ref[...]  # (M, 4)

    # BCEWithLogitsLoss vs. all-ones target (GANLoss(..., True)):
    #   loss = softplus(-x) = max(x,0) - x + log(1 + exp(-|x|))
    per = (jnp.maximum(logits, 0.0) - logits
           + jnp.log(1.0 + jnp.exp(-jnp.abs(logits))))           # (M, P) f32

    # ---- scalar epilogue: per-stage means -> weighted cumulative sums --------
    denom = float(batch * logits.shape[-1])
    total = jnp.float32(0.0)
    for s in range(num_stages):
        stage_mean = jnp.sum(per[s * batch:(s + 1) * batch, :]) / denom
        total = total + stage_mean * stage_w_ref[s]
        cum_ref[s] = total                 # losses['loss/G_s'] (running total)
    g_total = total / float(num_stages)
    gtot_ref[0] = g_total
    loss_ref[0] = base_loss_ref[0] + 0.01 * g_total


def fused_gan_loss_call(x_new, kernel_mats, stage_w, base_loss, *,
                        batch, num_stages, x_win_stride, neg_slope=0.2):
    """One pallas_call: netD forward for all refine stages + full loss epilogue."""
    (w1_blocks, b1), (w2, b2), (w3, b3), (w4, b4) = kernel_mats
    kernel = functools.partial(
        _netd_gan_loss_kernel, batch=batch, num_stages=num_stages,
        neg_slope=neg_slope, x_win_stride=x_win_stride)
    n_vmem = 1 + len(w1_blocks) + 1 + 6          # x, 4 w1 blocks, b1, w2..b4
    return pl.pallas_call(
        kernel,
        out_shape=(jax.ShapeDtypeStruct((num_stages,), jnp.float32),
                   jax.ShapeDtypeStruct((1,), jnp.float32),
                   jax.ShapeDtypeStruct((1,), jnp.float32)),
        in_specs=([pl.BlockSpec(memory_space=pltpu.MemorySpace.SMEM)] * 2
                  + [pl.BlockSpec(memory_space=pltpu.MemorySpace.VMEM)] * n_vmem),
        out_specs=(pl.BlockSpec(memory_space=pltpu.MemorySpace.SMEM),
                   pl.BlockSpec(memory_space=pltpu.MemorySpace.SMEM),
                   pl.BlockSpec(memory_space=pltpu.MemorySpace.SMEM)),
    )(stage_w, base_loss, x_new, *w1_blocks, b1, w2, b2, w3, b3, w4, b4)


# ---------------- synthetic PatchGAN netD: conv params -> matmul weights -----

def make_netd_conv_params(key, in_ch=4, ndf=8):
    """Deterministic small PatchGAN-style discriminator parameters."""
    defs = [  # (kh, kw, cin, cout, stride, pad, lrelu_slope)
        (4, 4, in_ch,   ndf,     2, 1, 0.2),
        (4, 4, ndf,     2 * ndf, 2, 1, 0.2),
        (4, 4, 2 * ndf, 2 * ndf, 1, 1, 0.2),
        (4, 4, 2 * ndf, 1,       1, 1, None),   # final logits layer
    ]
    params = []
    for (kh, kw, cin, cout, s, p, slope) in defs:
        key, kw_key, kb_key = jax.random.split(key, 3)
        w = 0.05 * jax.random.normal(kw_key, (kh, kw, cin, cout), jnp.float32)
        b = 0.05 * jax.random.normal(kb_key, (cout,), jnp.float32)
        params.append((np.asarray(w), np.asarray(b), s, p, slope))
    return params


def unroll_conv(w, b, in_shape, stride, pad):
    """Exact dense (Cin*H*W, Cout*Ho*Wo) matrix equivalent of Conv2d applied to
    an NCHW-flattened input (zero padding baked into the matrix)."""
    kh, kw, cin, cout = w.shape
    Cin, H, W = in_shape
    assert cin == Cin
    Ho = (H + 2 * pad - kh) // stride + 1
    Wo = (W + 2 * pad - kw) // stride + 1
    Wbig = np.zeros((Cin * H * W, cout * Ho * Wo), np.float32)
    for co in range(cout):
        for ho in range(Ho):
            for wo in range(Wo):
                oidx = co * Ho * Wo + ho * Wo + wo
                for i in range(kh):
                    hi = ho * stride + i - pad
                    if hi < 0 or hi >= H:
                        continue
                    for j in range(kw):
                        wi = wo * stride + j - pad
                        if wi < 0 or wi >= W:
                            continue
                        for ci in range(Cin):
                            Wbig[ci * H * W + hi * W + wi, oidx] = w[i, j, ci, co]
    bbig = np.repeat(np.asarray(b), Ho * Wo)
    return Wbig, bbig, (cout, Ho, Wo)


def build_netd_matrices(conv_params, in_shape):
    """Build the kernel weights:
       * layer 1: exact band blocks of the (h-major, h-padded) Toeplitz,
       * layers 2-4: small Toeplitz matmuls (layer-2 rows permuted to consume
         layer-1's ho-major output ordering; 144-wide dims zero-padded to 256)."""
    (w1, b1, s1, p1, _), (w2, b2, s2, p2, _), (w3, b3, s3, p3, _), \
        (w4, b4, s4, p4, _) = conv_params
    Cin, H, W = in_shape
    kh1 = w1.shape[0]
    hslab = Cin * W                                   # elems per input h-slab (64)

    # ---- layer 1: canonical Toeplitz -> h-major padded rows, ho-major cols ---
    T1, b1big, shp1 = unroll_conv(w1, b1, in_shape, s1, p1)        # (1024, 512)
    C1, H1, W1o = shp1
    rowmap = np.zeros(Cin * H * W, np.int64)
    for ci in range(Cin):
        for hi in range(H):
            for wi in range(W):
                rowmap[ci * H * W + hi * W + wi] = (hi + p1) * hslab + ci * W + wi
    A = np.zeros(((H + 2 * p1) * hslab, T1.shape[1]), np.float32)
    A[rowmap, :] = T1
    perm = np.zeros(C1 * H1 * W1o, np.int64)          # new (ho, co, wo) ordering
    for ho in range(H1):
        for co in range(C1):
            for wo in range(W1o):
                perm[(ho * C1 + co) * W1o + wo] = (co * H1 + ho) * W1o + wo
    T1h = A[:, perm]
    b1_h = b1big[perm]

    # exact band decomposition over output-row pairs (all 128-lane aligned)
    assert H1 % 2 == 0
    n_pairs = H1 // 2
    col_blk = 2 * C1 * W1o                            # 128
    row_win = (s1 + kh1) * hslab                      # 384
    x_win_stride = 2 * s1 * hslab                     # 256
    blocks, cover = [], np.zeros_like(T1h)
    for t in range(n_pairs):
        r0, c0 = t * x_win_stride, t * col_blk
        blk = T1h[r0:r0 + row_win, c0:c0 + col_blk]
        cover[r0:r0 + row_win, c0:c0 + col_blk] = blk
        blocks.append(blk)
    assert np.array_equal(cover, T1h), "layer-1 band decomposition must be exact"

    # ---- layers 2-4: small Toeplitz, layer-2 rows follow the ho-major layout -
    T2, b2big, shp2 = unroll_conv(w2, b2, shp1, s2, p2)            # (512, 256)
    T2u = T2[perm, :]
    T3, b3big, shp3 = unroll_conv(w3, b3, shp2, s3, p3)            # (256, 144)
    T4, b4big, _ = unroll_conv(w4, b4, shp3, s4, p4)               # (144, 4)

    n3 = T3.shape[1]
    n3p = ((n3 + 127) // 128) * 128                                # 144 -> 256
    T3p = np.zeros((T3.shape[0], n3p), np.float32); T3p[:, :n3] = T3
    b3p = np.zeros((n3p,), np.float32);            b3p[:n3] = b3big
    T4p = np.zeros((n3p, T4.shape[1]), np.float32); T4p[:n3, :] = T4

    def as_bf16(a): return jnp.asarray(a, jnp.bfloat16)
    def as_bias(a): return jnp.asarray(a, jnp.float32).reshape(1, -1)

    kernel_mats = (
        (tuple(as_bf16(b) for b in blocks), as_bias(b1_h)),
        (as_bf16(T2u), as_bias(b2big)),
        (as_bf16(T3p), as_bias(b3p)),
        (as_bf16(T4p), as_bias(b4big)),
    )
    layout = dict(hslab_pad=p1 * hslab, x_cols=(H + 2 * p1) * hslab,
                  x_win_stride=x_win_stride)
    return kernel_mats, layout


# ---------------------- jitted generator GAN-loss branch ---------------------

def _assemble_x(stage_inputs, hslab_pad, pad_rows):
    """Stage-stacked, h-major, zero h-padded, bf16 input slab (one XLA fusion)."""
    xs = []
    for rgb, dep in stage_inputs:
        x = jnp.concatenate([rgb, dep], axis=1)                  # torch.cat((rgb, dep), 1)
        b, c, h, w = x.shape
        x = jnp.transpose(x, (0, 2, 1, 3)).reshape(b, h * c * w)  # h-major flatten
        xs.append(jnp.pad(x, ((0, 0), (hslab_pad, hslab_pad))))
    x_all = jnp.concatenate(xs, axis=0)
    if pad_rows:
        x_all = jnp.pad(x_all, ((0, pad_rows), (0, 0)))
    return x_all.astype(jnp.bfloat16)


def make_generator_gan_loss_fn(kernel_mats, layout, num_stages, batch):
    m = num_stages * batch
    m_pad = -(-m // 16) * 16                     # full bf16 sublane tile (8 -> 16)

    @jax.jit
    def gan_loss_fn(stage_inputs, stage_w, base_loss):
        x_new = _assemble_x(stage_inputs, layout['hslab_pad'], m_pad - m)
        cum, gtot, loss = fused_gan_loss_call(
            x_new, kernel_mats, stage_w, base_loss,
            batch=batch, num_stages=num_stages,
            x_win_stride=layout['x_win_stride'])
        return cum, gtot[0], loss[0]

    return gan_loss_fn


# ------------------------ pix2pix_loss.forward (G path) ----------------------

def pix2pix_loss_forward(outputs, losses, epoch, gan_loss_fn,
                         refine_stage, stage_weight):
    """Reproduces pix2pix_loss.forward loss computation (generator branch)."""
    start_gan, stop_gan = 20, 30
    losses = dict(losses)
    outputs = dict(outputs)
    outputs['D_update'] = False
    outputs['G_update'] = False

    if epoch % 2 != 0 and start_gan < epoch < stop_gan:
        outputs['D_update'] = True
        # TODO(synk): backward_D (random crop + random-scale F.interpolate,
        # discriminator update, GAN_loss_D.backward(), opt_d.step()) not translated.
    else:
        outputs['G_update'] = start_gan < epoch < stop_gan
        if start_gan < epoch < stop_gan:
            stage_inputs = tuple(
                (outputs[('color', 1, s)], outputs[('depth', 0, s)])
                for s in refine_stage)
            sw = jnp.asarray([stage_weight[s] for s in refine_stage], jnp.float32)
            base = jnp.reshape(losses['loss'], (1,)).astype(jnp.float32)
            g_cum, g_total, new_loss = gan_loss_fn(stage_inputs, sw, base)
            for idx, s in enumerate(refine_stage):
                losses['loss/G_{}'.format(s)] = g_cum[idx]
            losses['loss/G_total'] = g_total
            losses['loss'] = new_loss
        # TODO(synk): losses['loss'].backward() and opt_g.step() (autograd +
        # optimizer state update) have no Pallas equivalent.
    return outputs, losses


# ------------------------- independent f32 conv reference --------------------

def reference_losses(stage_inputs, conv_params, weights, base_loss):
    cums, total = [], jnp.float32(0.0)
    for idx, (rgb, dep) in enumerate(stage_inputs):
        a = jnp.concatenate([rgb, dep], axis=1)
        for (w, b, s, p, slope) in conv_params:
            w_oihw = jnp.transpose(jnp.asarray(w), (3, 2, 0, 1))
            a = lax.conv_general_dilated(
                a, w_oihw, (s, s), [(p, p), (p, p)],
                dimension_numbers=('NCHW', 'OIHW', 'NCHW'))
            a = a + jnp.asarray(b).reshape(1, -1, 1, 1)
            if slope is not None:
                a = jnp.where(a >= 0.0, a, a * slope)
        per = jnp.maximum(a, 0.0) - a + jnp.log1p(jnp.exp(-jnp.abs(a)))
        total = total + jnp.mean(per) * weights[idx]
        cums.append(total)
    g_total = total / len(stage_inputs)
    return jnp.stack(cums), g_total, base_loss + 0.01 * g_total


# ------------------------------------ main -----------------------------------

if __name__ == "__main__":
    key = jax.random.PRNGKey(0)
    B, H, W = 2, 16, 16
    refine_stage = list(range(4))                 # opt.refine_stage = 4
    stage_weight = [0.2, 0.5, 0.8, 1]

    key, kd = jax.random.split(key)
    conv_params = make_netd_conv_params(kd, in_ch=4, ndf=8)
    kernel_mats, layout = build_netd_matrices(conv_params, (4, H, W))
    gan_loss_fn = make_generator_gan_loss_fn(kernel_mats, layout,
                                             num_stages=len(refine_stage), batch=B)

    # synthetic `outputs` dict (PyTorch NCHW convention)
    outputs = {}
    for s in refine_stage:
        key, k1, k2 = jax.random.split(key, 3)
        outputs[('color', 1, s)] = jax.random.uniform(k1, (B, 3, H, W), jnp.float32)
        outputs[('depth', 0, s)] = jax.random.uniform(k2, (B, 1, H, W), jnp.float32) * 9.0 + 1.0

    losses = {'loss': jnp.float32(1.2345)}
    epoch = 22   # even and inside (start_gan, stop_gan) -> generator GAN branch

    outputs, losses = pix2pix_loss_forward(
        outputs, losses, epoch, gan_loss_fn, refine_stage, stage_weight)
    jax.block_until_ready(losses['loss'])
    jax.block_until_ready(losses['loss/G_total'])

    # correctness check vs. a plain f32 conv reference (bf16 kernel -> loose tol)
    stage_inputs = tuple((outputs[('color', 1, s)], outputs[('depth', 0, s)])
                         for s in refine_stage)
    ref_cum, ref_gtot, ref_loss = reference_losses(
        stage_inputs, conv_params,
        [stage_weight[s] for s in refine_stage], jnp.float32(1.2345))
    got_cum = jnp.stack([losses['loss/G_{}'.format(s)] for s in refine_stage])
    np.testing.assert_allclose(np.asarray(got_cum), np.asarray(ref_cum),
                               rtol=5e-2, atol=5e-2)
    np.testing.assert_allclose(float(losses['loss/G_total']), float(ref_gtot),
                               rtol=5e-2, atol=5e-2)
    np.testing.assert_allclose(float(losses['loss']), float(ref_loss),
                               rtol=5e-2, atol=5e-2)

    print("KERNEL_OK")
</pallas_src>

<mosaic_0001>
module attributes {stable_mosaic.version = 11 : i64} {
  func.func @_netd_gan_loss_kernel(%arg0: memref<4xf32, #tpu.memory_space<smem>>, %arg1: memref<1xf32, #tpu.memory_space<smem>>, %arg2: memref<16x1152xbf16, #tpu.memory_space<vmem>>, %arg3: memref<384x128xbf16, #tpu.memory_space<vmem>>, %arg4: memref<384x128xbf16, #tpu.memory_space<vmem>>, %arg5: memref<384x128xbf16, #tpu.memory_space<vmem>>, %arg6: memref<384x128xbf16, #tpu.memory_space<vmem>>, %arg7: memref<1x512xf32, #tpu.memory_space<vmem>>, %arg8: memref<512x256xbf16, #tpu.memory_space<vmem>>, %arg9: memref<1x256xf32, #tpu.memory_space<vmem>>, %arg10: memref<256x256xbf16, #tpu.memory_space<vmem>>, %arg11: memref<1x256xf32, #tpu.memory_space<vmem>>, %arg12: memref<256x4xbf16, #tpu.memory_space<vmem>>, %arg13: memref<1x4xf32, #tpu.memory_space<vmem>>, %arg14: memref<4xf32, #tpu.memory_space<smem>>, %arg15: memref<1xf32, #tpu.memory_space<smem>>, %arg16: memref<1xf32, #tpu.memory_space<smem>>) attributes {dimension_semantics = [], scalar_prefetch = 0 : i64, scratch_operands = 0 : i64, tpu.core_type = #tpu.core_type<tc>} {
    %c0 = arith.constant 0 : index
    %c0_0 = arith.constant 0 : index
    %0 = vector.load %arg2[%c0, %c0_0] : memref<16x1152xbf16, #tpu.memory_space<vmem>>, vector<16x384xbf16>
    %c0_1 = arith.constant 0 : index
    %c0_2 = arith.constant 0 : index
    %1 = vector.load %arg3[%c0_1, %c0_2] : memref<384x128xbf16, #tpu.memory_space<vmem>>, vector<384x128xbf16>
    %cst = arith.constant dense<0.000000e+00> : vector<16x128xf32>
    %2 = tpu.matmul %0, %1, %cst {dimension_numbers = #tpu.dot_dimension_numbers<[1], [0], [0], [1], [0, 0, 1, 1], [], []>} : vector<16x384xbf16>, vector<384x128xbf16>, vector<16x128xf32> -> vector<16x128xf32>
    %c0_3 = arith.constant 0 : index
    %c256 = arith.constant 256 : index
    %3 = vector.load %arg2[%c0_3, %c256] : memref<16x1152xbf16, #tpu.memory_space<vmem>>, vector<16x384xbf16>
    %c0_4 = arith.constant 0 : index
    %c0_5 = arith.constant 0 : index
    %4 = vector.load %arg4[%c0_4, %c0_5] : memref<384x128xbf16, #tpu.memory_space<vmem>>, vector<384x128xbf16>
    %cst_6 = arith.constant dense<0.000000e+00> : vector<16x128xf32>
    %5 = tpu.matmul %3, %4, %cst_6 {dimension_numbers = #tpu.dot_dimension_numbers<[1], [0], [0], [1], [0, 0, 1, 1], [], []>} : vector<16x384xbf16>, vector<384x128xbf16>, vector<16x128xf32> -> vector<16x128xf32>
    %c0_7 = arith.constant 0 : index
    %c512 = arith.constant 512 : index
    %6 = vector.load %arg2[%c0_7, %c512] : memref<16x1152xbf16, #tpu.memory_space<vmem>>, vector<16x384xbf16>
    %c0_8 = arith.constant 0 : index
    %c0_9 = arith.constant 0 : index
    %7 = vector.load %arg5[%c0_8, %c0_9] : memref<384x128xbf16, #tpu.memory_space<vmem>>, vector<384x128xbf16>
    %cst_10 = arith.constant dense<0.000000e+00> : vector<16x128xf32>
    %8 = tpu.matmul %6, %7, %cst_10 {dimension_numbers = #tpu.dot_dimension_numbers<[1], [0], [0], [1], [0, 0, 1, 1], [], []>} : vector<16x384xbf16>, vector<384x128xbf16>, vector<16x128xf32> -> vector<16x128xf32>
    %c0_11 = arith.constant 0 : index
    %c768 = arith.constant 768 : index
    %9 = vector.load %arg2[%c0_11, %c768] : memref<16x1152xbf16, #tpu.memory_space<vmem>>, vector<16x384xbf16>
    %c0_12 = arith.constant 0 : index
    %c0_13 = arith.constant 0 : index
    %10 = vector.load %arg6[%c0_12, %c0_13] : memref<384x128xbf16, #tpu.memory_space<vmem>>, vector<384x128xbf16>
    %cst_14 = arith.constant dense<0.000000e+00> : vector<16x128xf32>
    %11 = tpu.matmul %9, %10, %cst_14 {dimension_numbers = #tpu.dot_dimension_numbers<[1], [0], [0], [1], [0, 0, 1, 1], [], []>} : vector<16x384xbf16>, vector<384x128xbf16>, vector<16x128xf32> -> vector<16x128xf32>
    %12 = tpu.concatenate %2, %5, %8, %11 in 1 : vector<16x128xf32>, vector<16x128xf32>, vector<16x128xf32>, vector<16x128xf32> -> vector<16x512xf32>
    %c0_15 = arith.constant 0 : index
    %c0_16 = arith.constant 0 : index
    %13 = vector.load %arg7[%c0_15, %c0_16] : memref<1x512xf32, #tpu.memory_space<vmem>>, vector<1x512xf32>
    %14 = vector.broadcast %13 : vector<1x512xf32> to vector<16x512xf32>
    %15 = arith.addf %12, %14 : vector<16x512xf32>
    %cst_17 = arith.constant 0.000000e+00 : f32
    %16 = vector.broadcast %cst_17 : f32 to vector<16x512xf32>
    %17 = arith.cmpf oge, %15, %16 : vector<16x512xf32>
    %cst_18 = arith.constant 2.000000e-01 : f32
    %18 = vector.broadcast %cst_18 : f32 to vector<16x512xf32>
    %19 = arith.mulf %15, %18 : vector<16x512xf32>
    %20 = arith.select %17, %15, %19 : vector<16x512xi1>, vector<16x512xf32>
    %21 = arith.truncf %20 : vector<16x512xf32> to vector<16x512xbf16>
    %c0_19 = arith.constant 0 : index
    %c0_20 = arith.constant 0 : index
    %22 = vector.load %arg8[%c0_19, %c0_20] : memref<512x256xbf16, #tpu.memory_space<vmem>>, vector<512x256xbf16>
    %cst_21 = arith.constant dense<0.000000e+00> : vector<16x256xf32>
    %23 = tpu.matmul %21, %22, %cst_21 {dimension_numbers = #tpu.dot_dimension_numbers<[1], [0], [0], [1], [0, 0, 1, 1], [], []>} : vector<16x512xbf16>, vector<512x256xbf16>, vector<16x256xf32> -> vector<16x256xf32>
    %c0_22 = arith.constant 0 : index
    %c0_23 = arith.constant 0 : index
    %24 = vector.load %arg9[%c0_22, %c0_23] : memref<1x256xf32, #tpu.memory_space<vmem>>, vector<1x256xf32>
    %25 = vector.broadcast %24 : vector<1x256xf32> to vector<16x256xf32>
    %26 = arith.addf %23, %25 : vector<16x256xf32>
    %cst_24 = arith.constant 0.000000e+00 : f32
    %27 = vector.broadcast %cst_24 : f32 to vector<16x256xf32>
    %28 = arith.cmpf oge, %26, %27 : vector<16x256xf32>
    %cst_25 = arith.constant 2.000000e-01 : f32
    %29 = vector.broadcast %cst_25 : f32 to vector<16x256xf32>
    %30 = arith.mulf %26, %29 : vector<16x256xf32>
    %31 = arith.select %28, %26, %30 : vector<16x256xi1>, vector<16x256xf32>
    %32 = arith.truncf %31 : vector<16x256xf32> to vector<16x256xbf16>
    %c0_26 = arith.constant 0 : index
    %c0_27 = arith.constant 0 : index
    %33 = vector.load %arg10[%c0_26, %c0_27] : memref<256x256xbf16, #tpu.memory_space<vmem>>, vector<256x256xbf16>
    %cst_28 = arith.constant dense<0.000000e+00> : vector<16x256xf32>
    %34 = tpu.matmul %32, %33, %cst_28 {dimension_numbers = #tpu.dot_dimension_numbers<[1], [0], [0], [1], [0, 0, 1, 1], [], []>} : vector<16x256xbf16>, vector<256x256xbf16>, vector<16x256xf32> -> vector<16x256xf32>
    %c0_29 = arith.constant 0 : index
    %c0_30 = arith.constant 0 : index
    %35 = vector.load %arg11[%c0_29, %c0_30] : memref<1x256xf32, #tpu.memory_space<vmem>>, vector<1x256xf32>
    %36 = vector.broadcast %35 : vector<1x256xf32> to vector<16x256xf32>
    %37 = arith.addf %34, %36 : vector<16x256xf32>
    %cst_31 = arith.constant 0.000000e+00 : f32
    %38 = vector.broadcast %cst_31 : f32 to vector<16x256xf32>
    %39 = arith.cmpf oge, %37, %38 : vector<16x256xf32>
    %cst_32 = arith.constant 2.000000e-01 : f32
    %40 = vector.broadcast %cst_32 : f32 to vector<16x256xf32>
    %41 = arith.mulf %37, %40 : vector<16x256xf32>
    %42 = arith.select %39, %37, %41 : vector<16x256xi1>, vector<16x256xf32>
    %43 = arith.truncf %42 : vector<16x256xf32> to vector<16x256xbf16>
    %c0_33 = arith.constant 0 : index
    %c0_34 = arith.constant 0 : index
    %44 = vector.load %arg12[%c0_33, %c0_34] : memref<256x4xbf16, #tpu.memory_space<vmem>>, vector<256x4xbf16>
    %cst_35 = arith.constant dense<0.000000e+00> : vector<16x4xf32>
    %45 = tpu.matmul %43, %44, %cst_35 {dimension_numbers = #tpu.dot_dimension_numbers<[1], [0], [0], [1], [0, 0, 1, 1], [], []>} : vector<16x256xbf16>, vector<256x4xbf16>, vector<16x4xf32> -> vector<16x4xf32>
    %c0_36 = arith.constant 0 : index
    %c0_37 = arith.constant 0 : index
    %46 = vector.load %arg13[%c0_36, %c0_37] : memref<1x4xf32, #tpu.memory_space<vmem>>, vector<1x4xf32>
    %47 = vector.broadcast %46 : vector<1x4xf32> to vector<16x4xf32>
    %48 = arith.addf %45, %47 : vector<16x4xf32>
    %cst_38 = arith.constant 0.000000e+00 : f32
    %49 = vector.broadcast %cst_38 : f32 to vector<16x4xf32>
    %50 = arith.maximumf %48, %49 : vector<16x4xf32>
    %51 = arith.subf %50, %48 : vector<16x4xf32>
    %52 = math.absf %48 : vector<16x4xf32>
    %cst_39 = arith.constant 0.000000e+00 : f32
    %53 = vector.broadcast %cst_39 : f32 to vector<16x4xf32>
    %54 = arith.subf %53, %52 : vector<16x4xf32>
    %55 = math.exp %54 : vector<16x4xf32>
    %cst_40 = arith.constant 1.000000e+00 : f32
    %56 = vector.broadcast %cst_40 : f32 to vector<16x4xf32>
    %57 = arith.addf %56, %55 : vector<16x4xf32>
    %58 = math.log %57 : vector<16x4xf32>
    %59 = arith.addf %51, %58 : vector<16x4xf32>
    %60 = vector.extract_strided_slice %59 {offsets = [0, 0], sizes = [2, 4], strides = [1, 1]} : vector<16x4xf32> to vector<2x4xf32>
    %61 = vector.shape_cast %60 : vector<2x4xf32> to vector<1x2x4xf32>
    %cst_41 = arith.constant dense<0.000000e+00> : vector<1xf32>
    %62 = vector.multi_reduction <add>, %61, %cst_41 [1, 2] : vector<1x2x4xf32> to vector<1xf32>
    %63 = vector.shape_cast %62 : vector<1xf32> to vector<1x1x1xf32>
    %64 = vector.extract %63[0, 0, 0] : f32 from vector<1x1x1xf32>
    %cst_42 = arith.constant 8.000000e+00 : f32
    %65 = arith.divf %64, %cst_42 : f32
    %c0_43 = arith.constant 0 : index
    %66 = memref.load %arg0[%c0_43] : memref<4xf32, #tpu.memory_space<smem>>
    %67 = arith.mulf %65, %66 : f32
    %cst_44 = arith.constant 0.000000e+00 : f32
    %68 = arith.addf %cst_44, %67 : f32
    %c0_45 = arith.constant 0 : index
    %69 = memref.load %arg14[%c0_45] : memref<4xf32, #tpu.memory_space<smem>>
    memref.store %68, %arg14[%c0_45] : memref<4xf32, #tpu.memory_space<smem>>
    %70 = vector.extract_strided_slice %59 {offsets = [2, 0], sizes = [2, 4], strides = [1, 1]} : vector<16x4xf32> to vector<2x4xf32>
    %71 = vector.shape_cast %70 : vector<2x4xf32> to vector<1x2x4xf32>
    %cst_46 = arith.constant dense<0.000000e+00> : vector<1xf32>
    %72 = vector.multi_reduction <add>, %71, %cst_46 [1, 2] : vector<1x2x4xf32> to vector<1xf32>
    %73 = vector.shape_cast %72 : vector<1xf32> to vector<1x1x1xf32>
    %74 = vector.extract %73[0, 0, 0] : f32 from vector<1x1x1xf32>
    %cst_47 = arith.constant 8.000000e+00 : f32
    %75 = arith.divf %74, %cst_47 : f32
    %c1 = arith.constant 1 : index
    %76 = memref.load %arg0[%c1] : memref<4xf32, #tpu.memory_space<smem>>
    %77 = arith.mulf %75, %76 : f32
    %78 = arith.addf %68, %77 : f32
    %c1_48 = arith.constant 1 : index
    %79 = memref.load %arg14[%c1_48] : memref<4xf32, #tpu.memory_space<smem>>
    memref.store %78, %arg14[%c1_48] : memref<4xf32, #tpu.memory_space<smem>>
    %80 = vector.extract_strided_slice %59 {offsets = [4, 0], sizes = [2, 4], strides = [1, 1]} : vector<16x4xf32> to vector<2x4xf32>
    %81 = vector.shape_cast %80 : vector<2x4xf32> to vector<1x2x4xf32>
    %cst_49 = arith.constant dense<0.000000e+00> : vector<1xf32>
    %82 = vector.multi_reduction <add>, %81, %cst_49 [1, 2] : vector<1x2x4xf32> to vector<1xf32>
    %83 = vector.shape_cast %82 : vector<1xf32> to vector<1x1x1xf32>
    %84 = vector.extract %83[0, 0, 0] : f32 from vector<1x1x1xf32>
    %cst_50 = arith.constant 8.000000e+00 : f32
    %85 = arith.divf %84, %cst_50 : f32
    %c2 = arith.constant 2 : index
    %86 = memref.load %arg0[%c2] : memref<4xf32, #tpu.memory_space<smem>>
    %87 = arith.mulf %85, %86 : f32
    %88 = arith.addf %78, %87 : f32
    %c2_51 = arith.constant 2 : index
    %89 = memref.load %arg14[%c2_51] : memref<4xf32, #tpu.memory_space<smem>>
    memref.store %88, %arg14[%c2_51] : memref<4xf32, #tpu.memory_space<smem>>
    %90 = vector.extract_strided_slice %59 {offsets = [6, 0], sizes = [2, 4], strides = [1, 1]} : vector<16x4xf32> to vector<2x4xf32>
    %91 = vector.shape_cast %90 : vector<2x4xf32> to vector<1x2x4xf32>
    %cst_52 = arith.constant dense<0.000000e+00> : vector<1xf32>
    %92 = vector.multi_reduction <add>, %91, %cst_52 [1, 2] : vector<1x2x4xf32> to vector<1xf32>
    %93 = vector.shape_cast %92 : vector<1xf32> to vector<1x1x1xf32>
    %94 = vector.extract %93[0, 0, 0] : f32 from vector<1x1x1xf32>
    %cst_53 = arith.constant 8.000000e+00 : f32
    %95 = arith.divf %94, %cst_53 : f32
    %c3 = arith.constant 3 : index
    %96 = memref.load %arg0[%c3] : memref<4xf32, #tpu.memory_space<smem>>
    %97 = arith.mulf %95, %96 : f32
    %98 = arith.addf %88, %97 : f32
    %c3_54 = arith.constant 3 : index
    %99 = memref.load %arg14[%c3_54] : memref<4xf32, #tpu.memory_space<smem>>
    memref.store %98, %arg14[%c3_54] : memref<4xf32, #tpu.memory_space<smem>>
    %cst_55 = arith.constant 4.000000e+00 : f32
    %100 = arith.divf %98, %cst_55 : f32
    %c0_56 = arith.constant 0 : index
    %101 = memref.load %arg15[%c0_56] : memref<1xf32, #tpu.memory_space<smem>>
    memref.store %100, %arg15[%c0_56] : memref<1xf32, #tpu.memory_space<smem>>
    %c0_57 = arith.constant 0 : index
    %102 = memref.load %arg1[%c0_57] : memref<1xf32, #tpu.memory_space<smem>>
    %cst_58 = arith.constant 0.00999999977 : f32
    %103 = arith.mulf %cst_58, %100 : f32
    %104 = arith.addf %102, %103 : f32
    %c0_59 = arith.constant 0 : index
    %105 = memref.load %arg16[%c0_59] : memref<1xf32, #tpu.memory_space<smem>>
    memref.store %104, %arg16[%c0_59] : memref<1xf32, #tpu.memory_space<smem>>
    return
  }
}

</mosaic_0001>

<llo_original>
// kernel: gan_loss_fn.1
$region0: #{gan_loss_fn.1}
  #allocation0 [shape = 'u32[]', space=smem, size = 0x4, offset = 0x4, fixed_abs, tag = 'smem constant byte address 0x4 - core index']
  #allocation1 [shape = 'u32[144,128]{1,0:T(1,128)}', space=vmem, size = 0x12000, scoped, tag = 'internal scratch']
  #allocation2 [shape = 'f32[1]{0:T(128)S(6)}', space=smem, size = 0x200, scoped, tag = 'scoped memory for gan_loss_fn.1']
  %s0 = inlined_call_operand.vmem [shape: f32[4], index: 0, kind: input, shape index: {}]
  %s1 = inlined_call_operand.<no memory space> [shape: f32[1], index: 1, kind: input, shape index: {}]
  %s2 = inlined_call_operand.vmem [shape: bf16[16,1152], index: 2, kind: input, shape index: {}]
  %s3 = inlined_call_operand.vmem [shape: bf16[384,128], index: 3, kind: input, shape index: {}]
  %s4 = inlined_call_operand.vmem [shape: bf16[384,128], index: 4, kind: input, shape index: {}, may-alias: {4,5}]
  %s5 = inlined_call_operand.vmem [shape: bf16[384,128], index: 5, kind: input, shape index: {}, may-alias: {4,5}]
  %s6 = inlined_call_operand.vmem [shape: bf16[384,128], index: 6, kind: input, shape index: {}]
  %s7 = inlined_call_operand.vmem [shape: f32[1,512], index: 7, kind: input, shape index: {}]
  %s8 = inlined_call_operand.vmem [shape: bf16[512,256], index: 8, kind: input, shape index: {}]
  %s9 = inlined_call_operand.vmem [shape: f32[1,256], index: 9, kind: input, shape index: {}]
  %s10 = inlined_call_operand.vmem [shape: bf16[256,256], index: 10, kind: input, shape index: {}]
  %s11 = inlined_call_operand.vmem [shape: f32[1,256], index: 11, kind: input, shape index: {}]
  %s12 = inlined_call_operand.vmem [shape: bf16[256,4], index: 12, kind: input, shape index: {}]
  %s13 = inlined_call_operand.vmem [shape: f32[1,4], index: 13, kind: input, shape index: {}]
  %s14 = inlined_call_operand.hbm [shape: f32[4], index: 14, kind: output, shape index: {0}]
  %s15 = inlined_call_operand.hbm [shape: f32[1], index: 15, kind: output, shape index: {1}]
  %s16 = inlined_call_operand.hbm [shape: f32[1], index: 16, kind: output, shape index: {2}]
  %17 = xla_tuple %s14, %s15, %s16
  %s18 = sld [smem:[#allocation0]]
  $region86: #{gan_loss_fn.1} parent=0
    _
  %s20 = ssub.s32 1, %s18
  %s21 = scalar_select 0, %s20, %s18
  %22 = sst [smem:[#allocation2]] %s1
  $region1: #{gan_loss_fn.1} parent=0
    #allocation3 [shape = 'u8[512]{0}', space=smem, size = 0x200, scoped, tag = 'input window, operand 0, single buffered']
    #allocation4 [shape = 's32[1]{0}', space=sflag, size = 0x4, scoped, tag = 'scoped memory for gan_loss_fn.1']
    #allocation5 [shape = 's32[1]{0}', space=sflag, size = 0x4, scoped, tag = 'scoped memory for gan_loss_fn.1']
    #allocation6 [shape = 'u8[512]{0}', space=smem, size = 0x200, scoped, tag = 'output window, operand 0, single buffered']
    #allocation7 [shape = 'u8[512]{0}', space=smem, size = 0x200, scoped, tag = 'output window, operand 1, single buffered']
    #allocation8 [shape = 's32[1]{0}', space=sflag, size = 0x4, scoped, tag = 'scoped memory for gan_loss_fn.1']
    #allocation9 [shape = 'u8[512]{0}', space=smem, size = 0x200, scoped, tag = 'output window, operand 2, single buffered']
    %23 = vsyncpa [#allocation5], 0
    %24 = vsyncpa [#allocation4], 0
    %25 = vsyncpa [#allocation8], 0
    // Predicated region
    $region2: #{gan_loss_fn.1} parent=1 // pred_check
      _
    $region3: #{gan_loss_fn.1} parent=1 // pred_check_branch
      %27 = sbr.rel (0) target = $region5
    $region4: #{gan_loss_fn.1} parent=1 // pred_region
      %s29 = ssub.s32 16, 16
      %30 = vsyncadd [#allocation5], %s29
      %s32 = sshll.u32 %s0, 4
      %s33 = int_to_ptr.vmem [resolvable:$true] %s32
      %35 = dma.vmem_to_smem %s33, 16, [#allocation3], [#allocation5]
    $region5: #{gan_loss_fn.1} parent=1 // pred_fallthru
      _
    // Predicated region
    $region6: #{gan_loss_fn.1} parent=1 // pred_check
      _
    $region7: #{gan_loss_fn.1} parent=1 // pred_check_branch
      %37 = sbr.rel (0) target = $region9
    $region8: #{gan_loss_fn.1} parent=1 // pred_region
      _
    $region9: #{gan_loss_fn.1} parent=1 // pred_fallthru
      _
    // Predicated region
    $region10: #{gan_loss_fn.1} parent=1 // pred_check
      _
    $region11: #{gan_loss_fn.1} parent=1 // pred_check_branch
      %39 = sbr.rel (0) target = $region13
    $region12: #{gan_loss_fn.1} parent=1 // pred_region
      _
    $region13: #{gan_loss_fn.1} parent=1 // pred_fallthru
      _
    // Predicated region
    $region14: #{gan_loss_fn.1} parent=1 // pred_check
      _
    $region15: #{gan_loss_fn.1} parent=1 // pred_check_branch
      %41 = sbr.rel (0) target = $region17
    $region16: #{gan_loss_fn.1} parent=1 // pred_region
      _
    $region17: #{gan_loss_fn.1} parent=1 // pred_fallthru
      _
    // Predicated region
    $region18: #{gan_loss_fn.1} parent=1 // pred_check
      _
    $region19: #{gan_loss_fn.1} parent=1 // pred_check_branch
      %43 = sbr.rel (0) target = $region21
    $region20: #{gan_loss_fn.1} parent=1 // pred_region
      _
    $region21: #{gan_loss_fn.1} parent=1 // pred_fallthru
      _
    // Predicated region
    $region22: #{gan_loss_fn.1} parent=1 // pred_check
      _
    $region23: #{gan_loss_fn.1} parent=1 // pred_check_branch
      %45 = sbr.rel (0) target = $region25
    $region24: #{gan_loss_fn.1} parent=1 // pred_region
      _
    $region25: #{gan_loss_fn.1} parent=1 // pred_fallthru
      _
    // Predicated region
    $region26: #{gan_loss_fn.1} parent=1 // pred_check
      _
    $region27: #{gan_loss_fn.1} parent=1 // pred_check_branch
      %47 = sbr.rel (0) target = $region29
    $region28: #{gan_loss_fn.1} parent=1 // pred_region
      _
    $region29: #{gan_loss_fn.1} parent=1 // pred_fallthru
      _
    // Predicated region
    $region30: #{gan_loss_fn.1} parent=1 // pred_check
      _
    $region31: #{gan_loss_fn.1} parent=1 // pred_check_branch
      %49 = sbr.rel (0) target = $region33
    $region32: #{gan_loss_fn.1} parent=1 // pred_region
      _
    $region33: #{gan_loss_fn.1} parent=1 // pred_fallthru
      _
    // Predicated region
    $region34: #{gan_loss_fn.1} parent=1 // pred_check
      _
    $region35: #{gan_loss_fn.1} parent=1 // pred_check_branch
      %51 = sbr.rel (0) target = $region37
    $region36: #{gan_loss_fn.1} parent=1 // pred_region
      _
    $region37: #{gan_loss_fn.1} parent=1 // pred_fallthru
      _
    // Predicated region
    $region38: #{gan_loss_fn.1} parent=1 // pred_check
      _
    $region39: #{gan_loss_fn.1} parent=1 // pred_check_branch
      %53 = sbr.rel (0) target = $region41
    $region40: #{gan_loss_fn.1} parent=1 // pred_region
      _
    $region41: #{gan_loss_fn.1} parent=1 // pred_fallthru
      _
    // Predicated region
    $region42: #{gan_loss_fn.1} parent=1 // pred_check
      _
    $region43: #{gan_loss_fn.1} parent=1 // pred_check_branch
      %55 = sbr.rel (0) target = $region45
    $region44: #{gan_loss_fn.1} parent=1 // pred_region
      _
    $region45: #{gan_loss_fn.1} parent=1 // pred_fallthru
      _
    // Predicated region
    $region46: #{gan_loss_fn.1} parent=1 // pred_check
      _
    $region47: #{gan_loss_fn.1} parent=1 // pred_check_branch
      %57 = sbr.rel (0) target = $region49
    $region48: #{gan_loss_fn.1} parent=1 // pred_region
      _
    $region49: #{gan_loss_fn.1} parent=1 // pred_fallthru
      _
    // Predicated region
    $region50: #{gan_loss_fn.1} parent=1 // pred_check
      _
    $region51: #{gan_loss_fn.1} parent=1 // pred_check_branch
      %59 = sbr.rel (0) target = $region53
    $region52: #{gan_loss_fn.1} parent=1 // pred_region
      _
    $region53: #{gan_loss_fn.1} parent=1 // pred_fallthru
      _
    // Predicated region
    $region54: #{gan_loss_fn.1} parent=1 // pred_check
      _
    $region55: #{gan_loss_fn.1} parent=1 // pred_check_branch
      %61 = sbr.rel (0) target = $region57
    $region56: #{gan_loss_fn.1} parent=1 // pred_region
      _
    $region57: #{gan_loss_fn.1} parent=1 // pred_fallthru
      _
    // Predicated region
    $region58: #{gan_loss_fn.1} parent=1 // pred_check
      _
    $region59: #{gan_loss_fn.1} parent=1 // pred_check_branch
      %63 = sbr.rel (0) target = $region61
    $region60: #{gan_loss_fn.1} parent=1 // pred_region
      %64 = dma.done [#allocation5], 16
    $region61: #{gan_loss_fn.1} parent=1 // pred_fallthru
      _
    %65 = sfence
    %v67 = vld [vmem:[%s2] sm:$0xff]
    %v68 = vld [vmem:[%s2 + $0x8] sm:$0xf]
    %v69 = vld [vmem:[%s2 + $0x24] sm:$0xff]
    %v70 = vld [vmem:[%s2 + $0x2c] sm:$0xf]
    %v71 = vld [vmem:[%s3] sm:$0xf]
    %v72 = vld [vmem:[%s3 + $0x4] sm:$0xf]
    %v73 = vld [vmem:[%s3 + $0x8] sm:$0xf]
    %v74 = vld [vmem:[%s3 + $0xc] sm:$0xf]
    %v75 = vld [vmem:[%s3 + $0x10] sm:$0xf]
    %v76 = vld [vmem:[%s3 + $0x14] sm:$0xf]
    %v77 = vld [vmem:[%s3 + $0x18] sm:$0xf]
    %v78 = vld [vmem:[%s3 + $0x1c] sm:$0xf]
    %v79 = vld [vmem:[%s3 + $0x20] sm:$0xf]
    %v80 = vld [vmem:[%s3 + $0x24] sm:$0xf]
    %v81 = vld [vmem:[%s3 + $0x28] sm:$0xf]
    %v82 = vld [vmem:[%s3 + $0x2c] sm:$0xf]
    %v83 = vld [vmem:[%s3 + $0x30] sm:$0xf]
    %v84 = vld [vmem:[%s3 + $0x34] sm:$0xf]
    %v85 = vld [vmem:[%s3 + $0x38] sm:$0xf]
    %v86 = vld [vmem:[%s3 + $0x3c] sm:$0xf]
    %v87 = vld [vmem:[%s3 + $0x40] sm:$0xf]
    %v88 = vld [vmem:[%s3 + $0x44] sm:$0xf]
    %v89 = vld [vmem:[%s3 + $0x48] sm:$0xf]
    %v90 = vld [vmem:[%s3 + $0x4c] sm:$0xf]
    %v91 = vld [vmem:[%s3 + $0x50] sm:$0xf]
    %v92 = vld [vmem:[%s3 + $0x54] sm:$0xf]
    %v93 = vld [vmem:[%s3 + $0x58] sm:$0xf]
    %v94 = vld [vmem:[%s3 + $0x5c] sm:$0xf]
    %v95 = vld [vmem:[%s3 + $0x60] sm:$0xf]
    %v96 = vld [vmem:[%s3 + $0x64] sm:$0xf]
    %v97 = vld [vmem:[%s3 + $0x68] sm:$0xf]
    %v98 = vld [vmem:[%s3 + $0x6c] sm:$0xf]
    %v99 = vld [vmem:[%s3 + $0x70] sm:$0xf]
    %v100 = vld [vmem:[%s3 + $0x74] sm:$0xf]
    %v101 = vld [vmem:[%s3 + $0x78] sm:$0xf]
    %v102 = vld [vmem:[%s3 + $0x7c] sm:$0xf]
    %v103 = vld [vmem:[%s3 + $0x80] sm:$0xf]
    %v104 = vld [vmem:[%s3 + $0x84] sm:$0xf]
    %v105 = vld [vmem:[%s3 + $0x88] sm:$0xf]
    %v106 = vld [vmem:[%s3 + $0x8c] sm:$0xf]
    %v107 = vld [vmem:[%s3 + $0x90] sm:$0xf]
    %v108 = vld [vmem:[%s3 + $0x94] sm:$0xf]
    %v109 = vld [vmem:[%s3 + $0x98] sm:$0xf]
    %v110 = vld [vmem:[%s3 + $0x9c] sm:$0xf]
    %v111 = vld [vmem:[%s3 + $0xa0] sm:$0xf]
    %v112 = vld [vmem:[%s3 + $0xa4] sm:$0xf]
    %v113 = vld [vmem:[%s3 + $0xa8] sm:$0xf]
    %v114 = vld [vmem:[%s3 + $0xac] sm:$0xf]
    %v115 = vld [vmem:[%s3 + $0xb0] sm:$0xf]
    %v116 = vld [vmem:[%s3 + $0xb4] sm:$0xf]
    %v117 = vld [vmem:[%s3 + $0xb8] sm:$0xf]
    %v118 = vld [vmem:[%s3 + $0xbc] sm:$0xf]
    %v123 = vunpack.c.l.b16 %v67
    %v124 = vunpack.c.h.b16 %v67
    %v125 = vunpack.c.l.b16 %v68
    %v126 = vunpack.c.l.b16 %v69
    %v127 = vunpack.c.h.b16 %v69
    %v128 = vunpack.c.l.b16 %v70
    %v129 = vpack.c.b16 %v126, %v123
    %v130 = vpack.c.b16 %v127, %v124
    %v131 = vpack.c.b16 %v128, %v125
    %v183 = vunpack.c.l.b16 %v71
    %v184 = vunpack.c.l.b16 %v72
    %v185 = vunpack.c.l.b16 %v73
    %v186 = vunpack.c.l.b16 %v74
    %v187 = vunpack.c.l.b16 %v75
    %v188 = vunpack.c.l.b16 %v76
    %v189 = vunpack.c.l.b16 %v77
    %v190 = vunpack.c.l.b16 %v78
    %v191 = vunpack.c.l.b16 %v79
    %v192 = vunpack.c.l.b16 %v80
    %v193 = vunpack.c.l.b16 %v81
    %v194 = vunpack.c.l.b16 %v82
    %v195 = vunpack.c.l.b16 %v83
    %v196 = vunpack.c.l.b16 %v84
    %v197 = vunpack.c.l.b16 %v85
    %v198 = vunpack.c.l.b16 %v86
    %v199 = vunpack.c.l.b16 %v87
    %v200 = vunpack.c.l.b16 %v88
    %v201 = vunpack.c.l.b16 %v89
    %v202 = vunpack.c.l.b16 %v90
    %v203 = vunpack.c.l.b16 %v91
    %v204 = vunpack.c.l.b16 %v92
    %v205 = vunpack.c.l.b16 %v93
    %v206 = vunpack.c.l.b16 %v94
    %v207 = vunpack.c.l.b16 %v95
    %v208 = vunpack.c.l.b16 %v96
    %v209 = vunpack.c.l.b16 %v97
    %v210 = vunpack.c.l.b16 %v98
    %v211 = vunpack.c.l.b16 %v99
    %v212 = vunpack.c.l.b16 %v100
    %v213 = vunpack.c.l.b16 %v101
    %v214 = vunpack.c.l.b16 %v102
    %v215 = vunpack.c.l.b16 %v103
    %v216 = vunpack.c.l.b16 %v104
    %v217 = vunpack.c.l.b16 %v105
    %v218 = vunpack.c.l.b16 %v106
    %v219 = vunpack.c.l.b16 %v107
    %v220 = vunpack.c.l.b16 %v108
    %v221 = vunpack.c.l.b16 %v109
    %v222 = vunpack.c.l.b16 %v110
    %v223 = vunpack.c.l.b16 %v111
    %v224 = vunpack.c.l.b16 %v112
    %v225 = vunpack.c.l.b16 %v113
    %v226 = vunpack.c.l.b16 %v114
    %v227 = vunpack.c.l.b16 %v115
    %v228 = vunpack.c.l.b16 %v116
    %v229 = vunpack.c.l.b16 %v117
    %v230 = vunpack.c.l.b16 %v118
    %v231 = vpack.c.b16 %v184, %v183
    %v232 = vpack.c.b16 %v186, %v185
    %v233 = vpack.c.b16 %v188, %v187
    %v234 = vpack.c.b16 %v190, %v189
    %v235 = vpack.c.b16 %v192, %v191
    %v236 = vpack.c.b16 %v194, %v193
    %v237 = vpack.c.b16 %v196, %v195
    %v238 = vpack.c.b16 %v198, %v197
    %v239 = vpack.c.b16 %v200, %v199
    %v240 = vpack.c.b16 %v202, %v201
    %v241 = vpack.c.b16 %v204, %v203
    %v242 = vpack.c.b16 %v206, %v205
    %v243 = vpack.c.b16 %v208, %v207
    %v244 = vpack.c.b16 %v210, %v209
    %v245 = vpack.c.b16 %v212, %v211
    %v246 = vpack.c.b16 %v214, %v213
    %v247 = vpack.c.b16 %v216, %v215
    %v248 = vpack.c.b16 %v218, %v217
    %v249 = vpack.c.b16 %v220, %v219
    %v250 = vpack.c.b16 %v222, %v221
    %v251 = vpack.c.b16 %v224, %v223
    %v252 = vpack.c.b16 %v226, %v225
    %v253 = vpack.c.b16 %v228, %v227
    %v254 = vpack.c.b16 %v230, %v229
    %279 = vmatprep.subr.bf16.mxu0 0
    %280 = vmatpush1.bf16.msra.mxu0 %v231
    %281 = vmatprep.subr.bf16.mxu0 0
    %282 = vmatpush1.bf16.msra.mxu0 %v232
    %283 = vmatprep.subr.bf16.mxu0 0
    %284 = vmatpush1.bf16.msra.mxu0 %v233
    %285 = vmatprep.subr.bf16.mxu0 0
    %286 = vmatpush1.bf16.msra.mxu0 %v234
    %287 = vmatprep.subr.bf16.mxu0 0
    %288 = vmatpush1.bf16.msra.mxu0 %v235
    %289 = vmatprep.subr.bf16.mxu0 0
    %290 = vmatpush1.bf16.msra.mxu0 %v236
    %291 = vmatprep.subr.bf16.mxu0 0
    %292 = vmatpush1.bf16.msra.mxu0 %v237
    %293 = vmatprep.subr.bf16.mxu0 0
    %294 = vmatpush1.bf16.msra.mxu0 %v238
    %295 = vmatprep.subr.bf16.mxu0 0
    %296 = vmatpush1.bf16.msra.mxu0 %v239
    %297 = vmatprep.subr.bf16.mxu0 0
    %298 = vmatpush1.bf16.msra.mxu0 %v240
    %299 = vmatprep.subr.bf16.mxu0 0
    %300 = vmatpush1.bf16.msra.mxu0 %v241
    %301 = vmatprep.subr.bf16.mxu0 0
    %302 = vmatpush1.bf16.msra.mxu0 %v242
    %303 = vmatprep.subr.bf16.mxu0 0
    %304 = vmatpush1.bf16.msra.mxu0 %v243
    %305 = vmatprep.subr.bf16.mxu0 0
    %306 = vmatpush1.bf16.msra.mxu0 %v244
    %307 = vmatprep.subr.bf16.mxu0 0
    %308 = vmatpush1.bf16.msra.mxu0 %v245
    %309 = vmatprep.subr.bf16.mxu0 0
    %310 = vmatpush1.bf16.msra.mxu0 %v246
    %311 = vmatprep.mubr.bf16.mxu0 %v130
    %312 = vmatmul.mubr.bf16.gmra.mrb[0].mxu0 %v129
    %v313 = vpop.f32.mrb[0].mxu0
    %v314 = vadd.f32 0.0, %v313
    %v315 = vpop.f32.mrb[0].mxu0
    %v316 = vpop.f32.mrb[0].mxu0
    %v317 = vadd.f32 0.0, %v316
    %v318 = vpop.f32.mrb[0].mxu0
    %319 = vdwg.mxu0
    %320 = vmatprep.subr.bf16.mxu0 0
    %321 = vmatpush1.bf16.msra.mxu0 %v247
    %322 = vmatprep.subr.bf16.mxu0 0
    %323 = vmatpush1.bf16.msra.mxu0 %v248
    %324 = vmatprep.subr.bf16.mxu0 0
    %325 = vmatpush1.bf16.msra.mxu0 %v249
    %326 = vmatprep.subr.bf16.mxu0 0
    %327 = vmatpush1.bf16.msra.mxu0 %v250
    %328 = vmatprep.subr.bf16.mxu0 0
    %329 = vmatpush1.bf16.msra.mxu0 %v251
    %330 = vmatprep.subr.bf16.mxu0 0
    %331 = vmatpush1.bf16.msra.mxu0 %v252
    %332 = vmatprep.subr.bf16.mxu0 0
    %333 = vmatpush1.bf16.msra.mxu0 %v253
    %334 = vmatprep.subr.bf16.mxu0 0
    %335 = vmatpush1.bf16.msra.mxu0 %v254
    %336 = vmatprep.subr.bf16.mxu0 0
    %337 = vmatpush1.bf16.msra.mxu0 0
    %338 = vmatprep.subr.bf16.mxu0 0
    %339 = vmatpush1.bf16.msra.mxu0 0
    %340 = vmatprep.subr.bf16.mxu0 0
    %341 = vmatpush1.bf16.msra.mxu0 0
    %342 = vmatprep.subr.bf16.mxu0 0
    %343 = vmatpush1.bf16.msra.mxu0 0
    %344 = vmatprep.subr.bf16.mxu0 0
    %345 = vmatpush1.bf16.msra.mxu0 0
    %346 = vmatprep.subr.bf16.mxu0 0
    %347 = vmatpush1.bf16.msra.mxu0 0
    %348 = vmatprep.subr.bf16.mxu0 0
    %349 = vmatpush1.bf16.msra.mxu0 0
    %350 = vmatprep.subr.bf16.mxu0 0
    %351 = vmatpush1.bf16.msra.mxu0 0
    %352 = vmatprep.mubr.bf16.mxu0 0
    %353 = vmatmul.mubr.bf16.gmra.mrb[0].mxu0 %v131
    %v354 = vpop.f32.mrb[0].mxu0
    %v355 = vadd.f32 %v314, %v354
    %v356 = vpop.f32.mrb[0].mxu0
    %v357 = vpop.f32.mrb[0].mxu0
    %v358 = vadd.f32 %v317, %v357
    %v359 = vpop.f32.mrb[0].mxu0
    %360 = vdwg.mxu0
    %v361 = vld [vmem:[%s2 + $0x8] sm:$0xff]
    %v362 = vld [vmem:[%s2 + $0x10] sm:$0xf]
    %v363 = vld [vmem:[%s2 + $0x2c] sm:$0xff]
    %v364 = vld [vmem:[%s2 + $0x34] sm:$0xf]
    %v365 = vld [vmem:[%s4] sm:$0xf]
    %v366 = vld [vmem:[%s4 + $0x4] sm:$0xf]
    %v367 = vld [vmem:[%s4 + $0x8] sm:$0xf]
    %v368 = vld [vmem:[%s4 + $0xc] sm:$0xf]
    %v369 = vld [vmem:[%s4 + $0x10] sm:$0xf]
    %v370 = vld [vmem:[%s4 + $0x14] sm:$0xf]
    %v371 = vld [vmem:[%s4 + $0x18] sm:$0xf]
    %v372 = vld [vmem:[%s4 + $0x1c] sm:$0xf]
    %v373 = vld [vmem:[%s4 + $0x20] sm:$0xf]
    %v374 = vld [vmem:[%s4 + $0x24] sm:$0xf]
    %v375 = vld [vmem:[%s4 + $0x28] sm:$0xf]
    %v376 = vld [vmem:[%s4 + $0x2c] sm:$0xf]
    %v377 = vld [vmem:[%s4 + $0x30] sm:$0xf]
    %v378 = vld [vmem:[%s4 + $0x34] sm:$0xf]
    %v379 = vld [vmem:[%s4 + $0x38] sm:$0xf]
    %v380 = vld [vmem:[%s4 + $0x3c] sm:$0xf]
    %v381 = vld [vmem:[%s4 + $0x40] sm:$0xf]
    %v382 = vld [vmem:[%s4 + $0x44] sm:$0xf]
    %v383 = vld [vmem:[%s4 + $0x48] sm:$0xf]
    %v384 = vld [vmem:[%s4 + $0x4c] sm:$0xf]
    %v385 = vld [vmem:[%s4 + $0x50] sm:$0xf]
    %v386 = vld [vmem:[%s4 + $0x54] sm:$0xf]
    %v387 = vld [vmem:[%s4 + $0x58] sm:$0xf]
    %v388 = vld [vmem:[%s4 + $0x5c] sm:$0xf]
    %v389 = vld [vmem:[%s4 + $0x60] sm:$0xf]
    %v390 = vld [vmem:[%s4 + $0x64] sm:$0xf]
    %v391 = vld [vmem:[%s4 + $0x68] sm:$0xf]
    %v392 = vld [vmem:[%s4 + $0x6c] sm:$0xf]
    %v393 = vld [vmem:[%s4 + $0x70] sm:$0xf]
    %v394 = vld [vmem:[%s4 + $0x74] sm:$0xf]
    %v395 = vld [vmem:[%s4 + $0x78] sm:$0xf]
    %v396 = vld [vmem:[%s4 + $0x7c] sm:$0xf]
    %v397 = vld [vmem:[%s4 + $0x80] sm:$0xf]
    %v398 = vld [vmem:[%s4 + $0x84] sm:$0xf]
    %v399 = vld [vmem:[%s4 + $0x88] sm:$0xf]
    %v400 = vld [vmem:[%s4 + $0x8c] sm:$0xf]
    %v401 = vld [vmem:[%s4 + $0x90] sm:$0xf]
    %v402 = vld [vmem:[%s4 + $0x94] sm:$0xf]
    %v403 = vld [vmem:[%s4 + $0x98] sm:$0xf]
    %v404 = vld [vmem:[%s4 + $0x9c] sm:$0xf]
    %v405 = vld [vmem:[%s4 + $0xa0] sm:$0xf]
    %v406 = vld [vmem:[%s4 + $0xa4] sm:$0xf]
    %v407 = vld [vmem:[%s4 + $0xa8] sm:$0xf]
    %v408 = vld [vmem:[%s4 + $0xac] sm:$0xf]
    %v409 = vld [vmem:[%s4 + $0xb0] sm:$0xf]
    %v410 = vld [vmem:[%s4 + $0xb4] sm:$0xf]
    %v411 = vld [vmem:[%s4 + $0xb8] sm:$0xf]
    %v412 = vld [vmem:[%s4 + $0xbc] sm:$0xf]
    %v417 = vunpack.c.l.b16 %v361
    %v418 = vunpack.c.h.b16 %v361
    %v419 = vunpack.c.l.b16 %v362
    %v420 = vunpack.c.l.b16 %v363
    %v421 = vunpack.c.h.b16 %v363
    %v422 = vunpack.c.l.b16 %v364
    %v423 = vpack.c.b16 %v420, %v417
    %v424 = vpack.c.b16 %v421, %v418
    %v425 = vpack.c.b16 %v422, %v419
    %v477 = vunpack.c.l.b16 %v365
    %v478 = vunpack.c.l.b16 %v366
    %v479 = vunpack.c.l.b16 %v367
    %v480 = vunpack.c.l.b16 %v368
    %v481 = vunpack.c.l.b16 %v369
    %v482 = vunpack.c.l.b16 %v370
    %v483 = vunpack.c.l.b16 %v371
    %v484 = vunpack.c.l.b16 %v372
    %v485 = vunpack.c.l.b16 %v373
    %v486 = vunpack.c.l.b16 %v374
    %v487 = vunpack.c.l.b16 %v375
    %v488 = vunpack.c.l.b16 %v376
    %v489 = vunpack.c.l.b16 %v377
    %v490 = vunpack.c.l.b16 %v378
    %v491 = vunpack.c.l.b16 %v379
    %v492 = vunpack.c.l.b16 %v380
    %v493 = vunpack.c.l.b16 %v381
    %v494 = vunpack.c.l.b16 %v382
    %v495 = vunpack.c.l.b16 %v383
    %v496 = vunpack.c.l.b16 %v384
    %v497 = vunpack.c.l.b16 %v385
    %v498 = vunpack.c.l.b16 %v386
    %v499 = vunpack.c.l.b16 %v387
    %v500 = vunpack.c.l.b16 %v388
    %v501 = vunpack.c.l.b16 %v389
    %v502 = vunpack.c.l.b16 %v390
    %v503 = vunpack.c.l.b16 %v391
    %v504 = vunpack.c.l.b16 %v392
    %v505 = vunpack.c.l.b16 %v393
    %v506 = vunpack.c.l.b16 %v394
    %v507 = vunpack.c.l.b16 %v395
    %v508 = vunpack.c.l.b16 %v396
    %v509 = vunpack.c.l.b16 %v397
    %v510 = vunpack.c.l.b16 %v398
    %v511 = vunpack.c.l.b16 %v399
    %v512 = vunpack.c.l.b16 %v400
    %v513 = vunpack.c.l.b16 %v401
    %v514 = vunpack.c.l.b16 %v402
    %v515 = vunpack.c.l.b16 %v403
    %v516 = vunpack.c.l.b16 %v404
    %v517 = vunpack.c.l.b16 %v405
    %v518 = vunpack.c.l.b16 %v406
    %v519 = vunpack.c.l.b16 %v407
    %v520 = vunpack.c.l.b16 %v408
    %v521 = vunpack.c.l.b16 %v409
    %v522 = vunpack.c.l.b16 %v410
    %v523 = vunpack.c.l.b16 %v411
    %v524 = vunpack.c.l.b16 %v412
    %v525 = vpack.c.b16 %v478, %v477
    %v526 = vpack.c.b16 %v480, %v479
    %v527 = vpack.c.b16 %v482, %v481
    %v528 = vpack.c.b16 %v484, %v483
    %v529 = vpack.c.b16 %v486, %v485
    %v530 = vpack.c.b16 %v488, %v487
    %v531 = vpack.c.b16 %v490, %v489
    %v532 = vpack.c.b16 %v492, %v491
    %v533 = vpack.c.b16 %v494, %v493
    %v534 = vpack.c.b16 %v496, %v495
    %v535 = vpack.c.b16 %v498, %v497
    %v536 = vpack.c.b16 %v500, %v499
    %v537 = vpack.c.b16 %v502, %v501
    %v538 = vpack.c.b16 %v504, %v503
    %v539 = vpack.c.b16 %v506, %v505
    %v540 = vpack.c.b16 %v508, %v507
    %v541 = vpack.c.b16 %v510, %v509
    %v542 = vpack.c.b16 %v512, %v511
    %v543 = vpack.c.b16 %v514, %v513
    %v544 = vpack.c.b16 %v516, %v515
    %v545 = vpack.c.b16 %v518, %v517
    %v546 = vpack.c.b16 %v520, %v519
    %v547 = vpack.c.b16 %v522, %v521
    %v548 = vpack.c.b16 %v524, %v523
    %573 = vmatprep.subr.bf16.mxu0 0
    %574 = vmatpush1.bf16.msra.mxu0 %v525
    %575 = vmatprep.subr.bf16.mxu0 0
    %576 = vmatpush1.bf16.msra.mxu0 %v526
    %577 = vmatprep.subr.bf16.mxu0 0
    %578 = vmatpush1.bf16.msra.mxu0 %v527
    %579 = vmatprep.subr.bf16.mxu0 0
    %580 = vmatpush1.bf16.msra.mxu0 %v528
    %581 = vmatprep.subr.bf16.mxu0 0
    %582 = vmatpush1.bf16.msra.mxu0 %v529
    %583 = vmatprep.subr.bf16.mxu0 0
    %584 = vmatpush1.bf16.msra.mxu0 %v530
    %585 = vmatprep.subr.bf16.mxu0 0
    %586 = vmatpush1.bf16.msra.mxu0 %v531
    %587 = vmatprep.subr.bf16.mxu0 0
    %588 = vmatpush1.bf16.msra.mxu0 %v532
    %589 = vmatprep.subr.bf16.mxu0 0
    %590 = vmatpush1.bf16.msra.mxu0 %v533
    %591 = vmatprep.subr.bf16.mxu0 0
    %592 = vmatpush1.bf16.msra.mxu0 %v534
    %593 = vmatprep.subr.bf16.mxu0 0
    %594 = vmatpush1.bf16.msra.mxu0 %v535
    %595 = vmatprep.subr.bf16.mxu0 0
    %596 = vmatpush1.bf16.msra.mxu0 %v536
    %597 = vmatprep.subr.bf16.mxu0 0
    %598 = vmatpush1.bf16.msra.mxu0 %v537
    %599 = vmatprep.subr.bf16.mxu0 0
    %600 = vmatpush1.bf16.msra.mxu0 %v538
    %601 = vmatprep.subr.bf16.mxu0 0
    %602 = vmatpush1.bf16.msra.mxu0 %v539
    %603 = vmatprep.subr.bf16.mxu0 0
    %604 = vmatpush1.bf16.msra.mxu0 %v540
    %605 = vmatprep.mubr.bf16.mxu0 %v424
    %606 = vmatmul.mubr.bf16.gmra.mrb[0].mxu0 %v423
    %v607 = vpop.f32.mrb[0].mxu0
    %v608 = vadd.f32 0.0, %v607
    %v609 = vpop.f32.mrb[0].mxu0
    %v610 = vpop.f32.mrb[0].mxu0
    %v611 = vadd.f32 0.0, %v610
    %v612 = vpop.f32.mrb[0].mxu0
    %613 = vdwg.mxu0
    %614 = vmatprep.subr.bf16.mxu0 0
    %615 = vmatpush1.bf16.msra.mxu0 %v541
    %616 = vmatprep.subr.bf16.mxu0 0
    %617 = vmatpush1.bf16.msra.mxu0 %v542
    %618 = vmatprep.subr.bf16.mxu0 0
    %619 = vmatpush1.bf16.msra.mxu0 %v543
    %620 = vmatprep.subr.bf16.mxu0 0
    %621 = vmatpush1.bf16.msra.mxu0 %v544
    %622 = vmatprep.subr.bf16.mxu0 0
    %623 = vmatpush1.bf16.msra.mxu0 %v545
    %624 = vmatprep.subr.bf16.mxu0 0
    %625 = vmatpush1.bf16.msra.mxu0 %v546
    %626 = vmatprep.subr.bf16.mxu0 0
    %627 = vmatpush1.bf16.msra.mxu0 %v547
    %628 = vmatprep.subr.bf16.mxu0 0
    %629 = vmatpush1.bf16.msra.mxu0 %v548
    %630 = vmatprep.subr.bf16.mxu0 0
    %631 = vmatpush1.bf16.msra.mxu0 0
    %632 = vmatprep.subr.bf16.mxu0 0
    %633 = vmatpush1.bf16.msra.mxu0 0
    %634 = vmatprep.subr.bf16.mxu0 0
    %635 = vmatpush1.bf16.msra.mxu0 0
    %636 = vmatprep.subr.bf16.mxu0 0
    %637 = vmatpush1.bf16.msra.mxu0 0
    %638 = vmatprep.subr.bf16.mxu0 0
    %639 = vmatpush1.bf16.msra.mxu0 0
    %640 = vmatprep.subr.bf16.mxu0 0
    %641 = vmatpush1.bf16.msra.mxu0 0
    %642 = vmatprep.subr.bf16.mxu0 0
    %643 = vmatpush1.bf16.msra.mxu0 0
    %644 = vmatprep.subr.bf16.mxu0 0
    %645 = vmatpush1.bf16.msra.mxu0 0
    %646 = vmatprep.mubr.bf16.mxu0 0
    %647 = vmatmul.mubr.bf16.gmra.mrb[0].mxu0 %v425
    %v648 = vpop.f32.mrb[0].mxu0
    %v649 = vadd.f32 %v608, %v648
    %v650 = vpop.f32.mrb[0].mxu0
    %v651 = vpop.f32.mrb[0].mxu0
    %v652 = vadd.f32 %v611, %v651
    %v653 = vpop.f32.mrb[0].mxu0
    %654 = vdwg.mxu0
    %v655 = vld [vmem:[%s2 + $0x10] sm:$0xff]
    %v656 = vld [vmem:[%s2 + $0x18] sm:$0xf]
    %v657 = vld [vmem:[%s2 + $0x34] sm:$0xff]
    %v658 = vld [vmem:[%s2 + $0x3c] sm:$0xf]
    %v659 = vld [vmem:[%s5] sm:$0xf]
    %v660 = vld [vmem:[%s5 + $0x4] sm:$0xf]
    %v661 = vld [vmem:[%s5 + $0x8] sm:$0xf]
    %v662 = vld [vmem:[%s5 + $0xc] sm:$0xf]
    %v663 = vld [vmem:[%s5 + $0x10] sm:$0xf]
    %v664 = vld [vmem:[%s5 + $0x14] sm:$0xf]
    %v665 = vld [vmem:[%s5 + $0x18] sm:$0xf]
    %v666 = vld [vmem:[%s5 + $0x1c] sm:$0xf]
    %v667 = vld [vmem:[%s5 + $0x20] sm:$0xf]
    %v668 = vld [vmem:[%s5 + $0x24] sm:$0xf]
    %v669 = vld [vmem:[%s5 + $0x28] sm:$0xf]
    %v670 = vld [vmem:[%s5 + $0x2c] sm:$0xf]
    %v671 = vld [vmem:[%s5 + $0x30] sm:$0xf]
    %v672 = vld [vmem:[%s5 + $0x34] sm:$0xf]
    %v673 = vld [vmem:[%s5 + $0x38] sm:$0xf]
    %v674 = vld [vmem:[%s5 + $0x3c] sm:$0xf]
    %v675 = vld [vmem:[%s5 + $0x40] sm:$0xf]
    %v676 = vld [vmem:[%s5 + $0x44] sm:$0xf]
    %v677 = vld [vmem:[%s5 + $0x48] sm:$0xf]
    %v678 = vld [vmem:[%s5 + $0x4c] sm:$0xf]
    %v679 = vld [vmem:[%s5 + $0x50] sm:$0xf]
    %v680 = vld [vmem:[%s5 + $0x54] sm:$0xf]
    %v681 = vld [vmem:[%s5 + $0x58] sm:$0xf]
    %v682 = vld [vmem:[%s5 + $0x5c] sm:$0xf]
    %v683 = vld [vmem:[%s5 + $0x60] sm:$0xf]
    %v684 = vld [vmem:[%s5 + $0x64] sm:$0xf]
    %v685 = vld [vmem:[%s5 + $0x68] sm:$0xf]
    %v686 = vld [vmem:[%s5 + $0x6c] sm:$0xf]
    %v687 = vld [vmem:[%s5 + $0x70] sm:$0xf]
    %v688 = vld [vmem:[%s5 + $0x74] sm:$0xf]
    %v689 = vld [vmem:[%s5 + $0x78] sm:$0xf]
    %v690 = vld [vmem:[%s5 + $0x7c] sm:$0xf]
    %v691 = vld [vmem:[%s5 + $0x80] sm:$0xf]
    %v692 = vld [vmem:[%s5 + $0x84] sm:$0xf]
    %v693 = vld [vmem:[%s5 + $0x88] sm:$0xf]
    %v694 = vld [vmem:[%s5 + $0x8c] sm:$0xf]
    %v695 = vld [vmem:[%s5 + $0x90] sm:$0xf]
    %v696 = vld [vmem:[%s5 + $0x94] sm:$0xf]
    %v697 = vld [vmem:[%s5 + $0x98] sm:$0xf]
    %v698 = vld [vmem:[%s5 + $0x9c] sm:$0xf]
    %v699 = vld [vmem:[%s5 + $0xa0] sm:$0xf]
    %v700 = vld [vmem:[%s5 + $0xa4] sm:$0xf]
    %v701 = vld [vmem:[%s5 + $0xa8] sm:$0xf]
    %v702 = vld [vmem:[%s5 + $0xac] sm:$0xf]
    %v703 = vld [vmem:[%s5 + $0xb0] sm:$0xf]
    %v704 = vld [vmem:[%s5 + $0xb4] sm:$0xf]
    %v705 = vld [vmem:[%s5 + $0xb8] sm:$0xf]
    %v706 = vld [vmem:[%s5 + $0xbc] sm:$0xf]
    %v711 = vunpack.c.l.b16 %v655
    %v712 = vunpack.c.h.b16 %v655
    %v713 = vunpack.c.l.b16 %v656
    %v714 = vunpack.c.l.b16 %v657
    %v715 = vunpack.c.h.b16 %v657
    %v716 = vunpack.c.l.b16 %v658
    %v717 = vpack.c.b16 %v714, %v711
    %v718 = vpack.c.b16 %v715, %v712
    %v719 = vpack.c.b16 %v716, %v713
    %v771 = vunpack.c.l.b16 %v659
    %v772 = vunpack.c.l.b16 %v660
    %v773 = vunpack.c.l.b16 %v661
    %v774 = vunpack.c.l.b16 %v662
    %v775 = vunpack.c.l.b16 %v663
    %v776 = vunpack.c.l.b16 %v664
    %v777 = vunpack.c.l.b16 %v665
    %v778 = vunpack.c.l.b16 %v666
    %v779 = vunpack.c.l.b16 %v667
    %v780 = vunpack.c.l.b16 %v668
    %v781 = vunpack.c.l.b16 %v669
    %v782 = vunpack.c.l.b16 %v670
    %v783 = vunpack.c.l.b16 %v671
    %v784 = vunpack.c.l.b16 %v672
    %v785 = vunpack.c.l.b16 %v673
    %v786 = vunpack.c.l.b16 %v674
    %v787 = vunpack.c.l.b16 %v675
    %v788 = vunpack.c.l.b16 %v676
    %v789 = vunpack.c.l.b16 %v677
    %v790 = vunpack.c.l.b16 %v678
    %v791 = vunpack.c.l.b16 %v679
    %v792 = vunpack.c.l.b16 %v680
    %v793 = vunpack.c.l.b16 %v681
    %v794 = vunpack.c.l.b16 %v682
    %v795 = vunpack.c.l.b16 %v683
    %v796 = vunpack.c.l.b16 %v684
    %v797 = vunpack.c.l.b16 %v685
    %v798 = vunpack.c.l.b16 %v686
    %v799 = vunpack.c.l.b16 %v687
    %v800 = vunpack.c.l.b16 %v688
    %v801 = vunpack.c.l.b16 %v689
    %v802 = vunpack.c.l.b16 %v690
    %v803 = vunpack.c.l.b16 %v691
    %v804 = vunpack.c.l.b16 %v692
    %v805 = vunpack.c.l.b16 %v693
    %v806 = vunpack.c.l.b16 %v694
    %v807 = vunpack.c.l.b16 %v695
    %v808 = vunpack.c.l.b16 %v696
    %v809 = vunpack.c.l.b16 %v697
    %v810 = vunpack.c.l.b16 %v698
    %v811 = vunpack.c.l.b16 %v699
    %v812 = vunpack.c.l.b16 %v700
    %v813 = vunpack.c.l.b16 %v701
    %v814 = vunpack.c.l.b16 %v702
    %v815 = vunpack.c.l.b16 %v703
    %v816 = vunpack.c.l.b16 %v704
    %v817 = vunpack.c.l.b16 %v705
    %v818 = vunpack.c.l.b16 %v706
    %v819 = vpack.c.b16 %v772, %v771
    %v820 = vpack.c.b16 %v774, %v773
    %v821 = vpack.c.b16 %v776, %v775
    %v822 = vpack.c.b16 %v778, %v777
    %v823 = vpack.c.b16 %v780, %v779
    %v824 = vpack.c.b16 %v782, %v781
    %v825 = vpack.c.b16 %v784, %v783
    %v826 = vpack.c.b16 %v786, %v785
    %v827 = vpack.c.b16 %v788, %v787
    %v828 = vpack.c.b16 %v790, %v789
    %v829 = vpack.c.b16 %v792, %v791
    %v830 = vpack.c.b16 %v794, %v793
    %v831 = vpack.c.b16 %v796, %v795
    %v832 = vpack.c.b16 %v798, %v797
    %v833 = vpack.c.b16 %v800, %v799
    %v834 = vpack.c.b16 %v802, %v801
    %v835 = vpack.c.b16 %v804, %v803
    %v836 = vpack.c.b16 %v806, %v805
    %v837 = vpack.c.b16 %v808, %v807
    %v838 = vpack.c.b16 %v810, %v809
    %v839 = vpack.c.b16 %v812, %v811
    %v840 = vpack.c.b16 %v814, %v813
    %v841 = vpack.c.b16 %v816, %v815
    %v842 = vpack.c.b16 %v818, %v817
    %867 = vmatprep.subr.bf16.mxu0 0
    %868 = vmatpush1.bf16.msra.mxu0 %v819
    %869 = vmatprep.subr.bf16.mxu0 0
    %870 = vmatpush1.bf16.msra.mxu0 %v820
    %871 = vmatprep.subr.bf16.mxu0 0
    %872 = vmatpush1.bf16.msra.mxu0 %v821
    %873 = vmatprep.subr.bf16.mxu0 0
    %874 = vmatpush1.bf16.msra.mxu0 %v822
    %875 = vmatprep.subr.bf16.mxu0 0
    %876 = vmatpush1.bf16.msra.mxu0 %v823
    %877 = vmatprep.subr.bf16.mxu0 0
    %878 = vmatpush1.bf16.msra.mxu0 %v824
    %879 = vmatprep.subr.bf16.mxu0 0
    %880 = vmatpush1.bf16.msra.mxu0 %v825
    %881 = vmatprep.subr.bf16.mxu0 0
    %882 = vmatpush1.bf16.msra.mxu0 %v826
    %883 = vmatprep.subr.bf16.mxu0 0
    %884 = vmatpush1.bf16.msra.mxu0 %v827
    %885 = vmatprep.subr.bf16.mxu0 0
    %886 = vmatpush1.bf16.msra.mxu0 %v828
    %887 = vmatprep.subr.bf16.mxu0 0
    %888 = vmatpush1.bf16.msra.mxu0 %v829
    %889 = vmatprep.subr.bf16.mxu0 0
    %890 = vmatpush1.bf16.msra.mxu0 %v830
    %891 = vmatprep.subr.bf16.mxu0 0
    %892 = vmatpush1.bf16.msra.mxu0 %v831
    %893 = vmatprep.subr.bf16.mxu0 0
    %894 = vmatpush1.bf16.msra.mxu0 %v832
    %895 = vmatprep.subr.bf16.mxu0 0
    %896 = vmatpush1.bf16.msra.mxu0 %v833
    %897 = vmatprep.subr.bf16.mxu0 0
    %898 = vmatpush1.bf16.msra.mxu0 %v834
    %899 = vmatprep.mubr.bf16.mxu0 %v718
    %900 = vmatmul.mubr.bf16.gmra.mrb[0].mxu0 %v717
    %v901 = vpop.f32.mrb[0].mxu0
    %v902 = vadd.f32 0.0, %v901
    %v903 = vpop.f32.mrb[0].mxu0
    %v904 = vpop.f32.mrb[0].mxu0
    %v905 = vadd.f32 0.0, %v904
    %v906 = vpop.f32.mrb[0].mxu0
    %907 = vdwg.mxu0
    %908 = vmatprep.subr.bf16.mxu0 0
    %909 = vmatpush1.bf16.msra.mxu0 %v835
    %910 = vmatprep.subr.bf16.mxu0 0
    %911 = vmatpush1.bf16.msra.mxu0 %v836
    %912 = vmatprep.subr.bf16.mxu0 0
    %913 = vmatpush1.bf16.msra.mxu0 %v837
    %914 = vmatprep.subr.bf16.mxu0 0
    %915 = vmatpush1.bf16.msra.mxu0 %v838
    %916 = vmatprep.subr.bf16.mxu0 0
    %917 = vmatpush1.bf16.msra.mxu0 %v839
    %918 = vmatprep.subr.bf16.mxu0 0
    %919 = vmatpush1.bf16.msra.mxu0 %v840
    %920 = vmatprep.subr.bf16.mxu0 0
    %921 = vmatpush1.bf16.msra.mxu0 %v841
    %922 = vmatprep.subr.bf16.mxu0 0
    %923 = vmatpush1.bf16.msra.mxu0 %v842
    %924 = vmatprep.subr.bf16.mxu0 0
    %925 = vmatpush1.bf16.msra.mxu0 0
    %926 = vmatprep.subr.bf16.mxu0 0
    %927 = vmatpush1.bf16.msra.mxu0 0
    %928 = vmatprep.subr.bf16.mxu0 0
    %929 = vmatpush1.bf16.msra.mxu0 0
    %930 = vmatprep.subr.bf16.mxu0 0
    %931 = vmatpush1.bf16.msra.mxu0 0
    %932 = vmatprep.subr.bf16.mxu0 0
    %933 = vmatpush1.bf16.msra.mxu0 0
    %934 = vmatprep.subr.bf16.mxu0 0
    %935 = vmatpush1.bf16.msra.mxu0 0
    %936 = vmatprep.subr.bf16.mxu0 0
    %937 = vmatpush1.bf16.msra.mxu0 0
    %938 = vmatprep.subr.bf16.mxu0 0
    %939 = vmatpush1.bf16.msra.mxu0 0
    %940 = vmatprep.mubr.bf16.mxu0 0
    %941 = vmatmul.mubr.bf16.gmra.mrb[0].mxu0 %v719
    %v942 = vpop.f32.mrb[0].mxu0
    %v943 = vadd.f32 %v902, %v942
    %v944 = vpop.f32.mrb[0].mxu0
    %v945 = vpop.f32.mrb[0].mxu0
    %v946 = vadd.f32 %v905, %v945
    %v947 = vpop.f32.mrb[0].mxu0
    %948 = vdwg.mxu0
    %v949 = vld [vmem:[%s2 + $0x18] sm:$0xff]
    %v950 = vld [vmem:[%s2 + $0x20] sm:$0xf]
    %v951 = vld [vmem:[%s2 + $0x3c] sm:$0xff]
    %v952 = vld [vmem:[%s2 + $0x44] sm:$0xf]
    %v953 = vld [vmem:[%s6] sm:$0xf]
    %v954 = vld [vmem:[%s6 + $0x4] sm:$0xf]
    %v955 = vld [vmem:[%s6 + $0x8] sm:$0xf]
    %v956 = vld [vmem:[%s6 + $0xc] sm:$0xf]
    %v957 = vld [vmem:[%s6 + $0x10] sm:$0xf]
    %v958 = vld [vmem:[%s6 + $0x14] sm:$0xf]
    %v959 = vld [vmem:[%s6 + $0x18] sm:$0xf]
    %v960 = vld [vmem:[%s6 + $0x1c] sm:$0xf]
    %v961 = vld [vmem:[%s6 + $0x20] sm:$0xf]
    %v962 = vld [vmem:[%s6 + $0x24] sm:$0xf]
    %v963 = vld [vmem:[%s6 + $0x28] sm:$0xf]
    %v964 = vld [vmem:[%s6 + $0x2c] sm:$0xf]
    %v965 = vld [vmem:[%s6 + $0x30] sm:$0xf]
    %v966 = vld [vmem:[%s6 + $0x34] sm:$0xf]
    %v967 = vld [vmem:[%s6 + $0x38] sm:$0xf]
    %v968 = vld [vmem:[%s6 + $0x3c] sm:$0xf]
    %v969 = vld [vmem:[%s6 + $0x40] sm:$0xf]
    %v970 = vld [vmem:[%s6 + $0x44] sm:$0xf]
    %v971 = vld [vmem:[%s6 + $0x48] sm:$0xf]
    %v972 = vld [vmem:[%s6 + $0x4c] sm:$0xf]
    %v973 = vld [vmem:[%s6 + $0x50] sm:$0xf]
    %v974 = vld [vmem:[%s6 + $0x54] sm:$0xf]
    %v975 = vld [vmem:[%s6 + $0x58] sm:$0xf]
    %v976 = vld [vmem:[%s6 + $0x5c] sm:$0xf]
    %v977 = vld [vmem:[%s6 + $0x60] sm:$0xf]
    %v978 = vld [vmem:[%s6 + $0x64] sm:$0xf]
    %v979 = vld [vmem:[%s6 + $0x68] sm:$0xf]
    %v980 = vld [vmem:[%s6 + $0x6c] sm:$0xf]
    %v981 = vld [vmem:[%s6 + $0x70] sm:$0xf]
    %v982 = vld [vmem:[%s6 + $0x74] sm:$0xf]
    %v983 = vld [vmem:[%s6 + $0x78] sm:$0xf]
    %v984 = vld [vmem:[%s6 + $0x7c] sm:$0xf]
    %v985 = vld [vmem:[%s6 + $0x80] sm:$0xf]
    %v986 = vld [vmem:[%s6 + $0x84] sm:$0xf]
    %v987 = vld [vmem:[%s6 + $0x88] sm:$0xf]
    %v988 = vld [vmem:[%s6 + $0x8c] sm:$0xf]
    %v989 = vld [vmem:[%s6 + $0x90] sm:$0xf]
    %v990 = vld [vmem:[%s6 + $0x94] sm:$0xf]
    %v991 = vld [vmem:[%s6 + $0x98] sm:$0xf]
    %v992 = vld [vmem:[%s6 + $0x9c] sm:$0xf]
    %v993 = vld [vmem:[%s6 + $0xa0] sm:$0xf]
    %v994 = vld [vmem:[%s6 + $0xa4] sm:$0xf]
    %v995 = vld [vmem:[%s6 + $0xa8] sm:$0xf]
    %v996 = vld [vmem:[%s6 + $0xac] sm:$0xf]
    %v997 = vld [vmem:[%s6 + $0xb0] sm:$0xf]
    %v998 = vld [vmem:[%s6 + $0xb4] sm:$0xf]
    %v999 = vld [vmem:[%s6 + $0xb8] sm:$0xf]
    %v1000 = vld [vmem:[%s6 + $0xbc] sm:$0xf]
    %v1005 = vunpack.c.l.b16 %v949
    %v1006 = vunpack.c.h.b16 %v949
    %v1007 = vunpack.c.l.b16 %v950
    %v1008 = vunpack.c.l.b16 %v951
    %v1009 = vunpack.c.h.b16 %v951
    %v1010 = vunpack.c.l.b16 %v952
    %v1011 = vpack.c.b16 %v1008, %v1005
    %v1012 = vpack.c.b16 %v1009, %v1006
    %v1013 = vpack.c.b16 %v1010, %v1007
    %v1065 = vunpack.c.l.b16 %v953
    %v1066 = vunpack.c.l.b16 %v954
    %v1067 = vunpack.c.l.b16 %v955
    %v1068 = vunpack.c.l.b16 %v956
    %v1069 = vunpack.c.l.b16 %v957
    %v1070 = vunpack.c.l.b16 %v958
    %v1071 = vunpack.c.l.b16 %v959
    %v1072 = vunpack.c.l.b16 %v960
    %v1073 = vunpack.c.l.b16 %v961
    %v1074 = vunpack.c.l.b16 %v962
    %v1075 = vunpack.c.l.b16 %v963
    %v1076 = vunpack.c.l.b16 %v964
    %v1077 = vunpack.c.l.b16 %v965
    %v1078 = vunpack.c.l.b16 %v966
    %v1079 = vunpack.c.l.b16 %v967
    %v1080 = vunpack.c.l.b16 %v968
    %v1081 = vunpack.c.l.b16 %v969
    %v1082 = vunpack.c.l.b16 %v970
    %v1083 = vunpack.c.l.b16 %v971
    %v1084 = vunpack.c.l.b16 %v972
    %v1085 = vunpack.c.l.b16 %v973
    %v1086 = vunpack.c.l.b16 %v974
    %v1087 = vunpack.c.l.b16 %v975
    %v1088 = vunpack.c.l.b16 %v976
    %v1089 = vunpack.c.l.b16 %v977
    %v1090 = vunpack.c.l.b16 %v978
    %v1091 = vunpack.c.l.b16 %v979
    %v1092 = vunpack.c.l.b16 %v980
    %v1093 = vunpack.c.l.b16 %v981
    %v1094 = vunpack.c.l.b16 %v982
    %v1095 = vunpack.c.l.b16 %v983
    %v1096 = vunpack.c.l.b16 %v984
    %v1097 = vunpack.c.l.b16 %v985
    %v1098 = vunpack.c.l.b16 %v986
    %v1099 = vunpack.c.l.b16 %v987
    %v1100 = vunpack.c.l.b16 %v988
    %v1101 = vunpack.c.l.b16 %v989
    %v1102 = vunpack.c.l.b16 %v990
    %v1103 = vunpack.c.l.b16 %v991
    %v1104 = vunpack.c.l.b16 %v992
    %v1105 = vunpack.c.l.b16 %v993
    %v1106 = vunpack.c.l.b16 %v994
    %v1107 = vunpack.c.l.b16 %v995
    %v1108 = vunpack.c.l.b16 %v996
    %v1109 = vunpack.c.l.b16 %v997
    %v1110 = vunpack.c.l.b16 %v998
    %v1111 = vunpack.c.l.b16 %v999
    %v1112 = vunpack.c.l.b16 %v1000
    %v1113 = vpack.c.b16 %v1066, %v1065
    %v1114 = vpack.c.b16 %v1068, %v1067
    %v1115 = vpack.c.b16 %v1070, %v1069
    %v1116 = vpack.c.b16 %v1072, %v1071
    %v1117 = vpack.c.b16 %v1074, %v1073
    %v1118 = vpack.c.b16 %v1076, %v1075
    %v1119 = vpack.c.b16 %v1078, %v1077
    %v1120 = vpack.c.b16 %v1080, %v1079
    %v1121 = vpack.c.b16 %v1082, %v1081
    %v1122 = vpack.c.b16 %v1084, %v1083
    %v1123 = vpack.c.b16 %v1086, %v1085
    %v1124 = vpack.c.b16 %v1088, %v1087
    %v1125 = vpack.c.b16 %v1090, %v1089
    %v1126 = vpack.c.b16 %v1092, %v1091
    %v1127 = vpack.c.b16 %v1094, %v1093
    %v1128 = vpack.c.b16 %v1096, %v1095
    %v1129 = vpack.c.b16 %v1098, %v1097
    %v1130 = vpack.c.b16 %v1100, %v1099
    %v1131 = vpack.c.b16 %v1102, %v1101
    %v1132 = vpack.c.b16 %v1104, %v1103
    %v1133 = vpack.c.b16 %v1106, %v1105
    %v1134 = vpack.c.b16 %v1108, %v1107
    %v1135 = vpack.c.b16 %v1110, %v1109
    %v1136 = vpack.c.b16 %v1112, %v1111
    %1161 = vmatprep.subr.bf16.mxu0 0
    %1162 = vmatpush1.bf16.msra.mxu0 %v1113
    %1163 = vmatprep.subr.bf16.mxu0 0
    %1164 = vmatpush1.bf16.msra.mxu0 %v1114
    %1165 = vmatprep.subr.bf16.mxu0 0
    %1166 = vmatpush1.bf16.msra.mxu0 %v1115
    %1167 = vmatprep.subr.bf16.mxu0 0
    %1168 = vmatpush1.bf16.msra.mxu0 %v1116
    %1169 = vmatprep.subr.bf16.mxu0 0
    %1170 = vmatpush1.bf16.msra.mxu0 %v1117
    %1171 = vmatprep.subr.bf16.mxu0 0
    %1172 = vmatpush1.bf16.msra.mxu0 %v1118
    %1173 = vmatprep.subr.bf16.mxu0 0
    %1174 = vmatpush1.bf16.msra.mxu0 %v1119
    %1175 = vmatprep.subr.bf16.mxu0 0
    %1176 = vmatpush1.bf16.msra.mxu0 %v1120
    %1177 = vmatprep.subr.bf16.mxu0 0
    %1178 = vmatpush1.bf16.msra.mxu0 %v1121
    %1179 = vmatprep.subr.bf16.mxu0 0
    %1180 = vmatpush1.bf16.msra.mxu0 %v1122
    %1181 = vmatprep.subr.bf16.mxu0 0
    %1182 = vmatpush1.bf16.msra.mxu0 %v1123
    %1183 = vmatprep.subr.bf16.mxu0 0
    %1184 = vmatpush1.bf16.msra.mxu0 %v1124
    %1185 = vmatprep.subr.bf16.mxu0 0
    %1186 = vmatpush1.bf16.msra.mxu0 %v1125
    %1187 = vmatprep.subr.bf16.mxu0 0
    %1188 = vmatpush1.bf16.msra.mxu0 %v1126
    %1189 = vmatprep.subr.bf16.mxu0 0
    %1190 = vmatpush1.bf16.msra.mxu0 %v1127
    %1191 = vmatprep.subr.bf16.mxu0 0
    %1192 = vmatpush1.bf16.msra.mxu0 %v1128
    %1193 = vmatprep.mubr.bf16.mxu0 %v1012
    %1194 = vmatmul.mubr.bf16.gmra.mrb[0].mxu0 %v1011
    %v1195 = vpop.f32.mrb[0].mxu0
    %v1196 = vadd.f32 0.0, %v1195
    %v1197 = vpop.f32.mrb[0].mxu0
    %v1198 = vpop.f32.mrb[0].mxu0
    %v1199 = vadd.f32 0.0, %v1198
    %v1200 = vpop.f32.mrb[0].mxu0
    %1201 = vdwg.mxu0
    %1202 = vmatprep.subr.bf16.mxu0 0
    %1203 = vmatpush1.bf16.msra.mxu0 %v1129
    %1204 = vmatprep.subr.bf16.mxu0 0
    %1205 = vmatpush1.bf16.msra.mxu0 %v1130
    %1206 = vmatprep.subr.bf16.mxu0 0
    %1207 = vmatpush1.bf16.msra.mxu0 %v1131
    %1208 = vmatprep.subr.bf16.mxu0 0
    %1209 = vmatpush1.bf16.msra.mxu0 %v1132
    %1210 = vmatprep.subr.bf16.mxu0 0
    %1211 = vmatpush1.bf16.msra.mxu0 %v1133
    %1212 = vmatprep.subr.bf16.mxu0 0
    %1213 = vmatpush1.bf16.msra.mxu0 %v1134
    %1214 = vmatprep.subr.bf16.mxu0 0
    %1215 = vmatpush1.bf16.msra.mxu0 %v1135
    %1216 = vmatprep.subr.bf16.mxu0 0
    %1217 = vmatpush1.bf16.msra.mxu0 %v1136
    %1218 = vmatprep.subr.bf16.mxu0 0
    %1219 = vmatpush1.bf16.msra.mxu0 0
    %1220 = vmatprep.subr.bf16.mxu0 0
    %1221 = vmatpush1.bf16.msra.mxu0 0
    %1222 = vmatprep.subr.bf16.mxu0 0
    %1223 = vmatpush1.bf16.msra.mxu0 0
    %1224 = vmatprep.subr.bf16.mxu0 0
    %1225 = vmatpush1.bf16.msra.mxu0 0
    %1226 = vmatprep.subr.bf16.mxu0 0
    %1227 = vmatpush1.bf16.msra.mxu0 0
    %1228 = vmatprep.subr.bf16.mxu0 0
    %1229 = vmatpush1.bf16.msra.mxu0 0
    %1230 = vmatprep.subr.bf16.mxu0 0
    %1231 = vmatpush1.bf16.msra.mxu0 0
    %1232 = vmatprep.subr.bf16.mxu0 0
    %1233 = vmatpush1.bf16.msra.mxu0 0
    %1234 = vmatprep.mubr.bf16.mxu0 0
    %1235 = vmatmul.mubr.bf16.gmra.mrb[0].mxu0 %v1013
    %v1236 = vpop.f32.mrb[0].mxu0
    %v1237 = vadd.f32 %v1196, %v1236
    %v1238 = vpop.f32.mrb[0].mxu0
    %v1239 = vpop.f32.mrb[0].mxu0
    %v1240 = vadd.f32 %v1199, %v1239
    %v1241 = vpop.f32.mrb[0].mxu0
    %1242 = vdwg.mxu0
    %v1243 = vld [vmem:[%s7] sm:$0xf]
    %v1245 = vlaneseq
    %v1246 = vshrl.u32 %v1245, 7
    %v1247 = vsub.s32 0, %v1246
    %v1248 = vrot.slane %v1243, %v1247
    %v1249 = vlaneseq
    %v1250 = vshrl.u32 %v1249, 7
    %v1251 = vsub.s32 1, %v1250
    %v1252 = vrot.slane %v1243, %v1251
    %v1253 = vlaneseq
    %v1254 = vshrl.u32 %v1253, 7
    %v1255 = vsub.s32 2, %v1254
    %v1256 = vrot.slane %v1243, %v1255
    %v1257 = vlaneseq
    %v1258 = vshrl.u32 %v1257, 7
    %v1259 = vsub.s32 3, %v1258
    %v1260 = vrot.slane %v1243, %v1259
    %v1265 = vadd.f32 %v355, %v1248
    %v1266 = vadd.f32 %v649, %v1252
    %v1267 = vadd.f32 %v943, %v1256
    %v1268 = vadd.f32 %v1237, %v1260
    %v1269 = vadd.f32 %v358, %v1248
    %v1270 = vadd.f32 %v652, %v1252
    %v1271 = vadd.f32 %v946, %v1256
    %v1272 = vadd.f32 %v1240, %v1260
    %vm1273 = vcmp.ge.f32.partialorder %v1265, 0.0
    %vm1274 = vcmp.ge.f32.partialorder %v1266, 0.0
    %vm1275 = vcmp.ge.f32.partialorder %v1267, 0.0
    %vm1276 = vcmp.ge.f32.partialorder %v1268, 0.0
    %vm1277 = vcmp.ge.f32.partialorder %v1269, 0.0
    %vm1278 = vcmp.ge.f32.partialorder %v1270, 0.0
    %vm1279 = vcmp.ge.f32.partialorder %v1271, 0.0
    %vm1280 = vcmp.ge.f32.partialorder %v1272, 0.0
    %v1281 = vmul.f32 %v1265, 0.2
    %v1282 = vmul.f32 %v1266, 0.2
    %v1283 = vmul.f32 %v1267, 0.2
    %v1284 = vmul.f32 %v1268, 0.2
    %v1285 = vmul.f32 %v1269, 0.2
    %v1286 = vmul.f32 %v1270, 0.2
    %v1287 = vmul.f32 %v1271, 0.2
    %v1288 = vmul.f32 %v1272, 0.2
    %v1289 = vsel %vm1273, %v1265, %v1281
    %v1290 = vsel %vm1274, %v1266, %v1282
    %v1291 = vsel %vm1275, %v1267, %v1283
    %v1292 = vsel %vm1276, %v1268, %v1284
    %v1293 = vsel %vm1277, %v1269, %v1285
    %v1294 = vsel %vm1278, %v1270, %v1286
    %v1295 = vsel %vm1279, %v1271, %v1287
    %v1296 = vsel %vm1280, %v1272, %v1288
    %v1297 = vpack.c.bf16 %v1293, %v1289
    %v1298 = vpack.c.bf16 %v1294, %v1290
    %v1299 = vpack.c.bf16 %v1295, %v1291
    %v1300 = vpack.c.bf16 %v1296, %v1292
    %v1301 = vld [vmem:[%s8] sm:$0xff]
    %v1302 = vld [vmem:[%s8 + $0x8] sm:$0xff]
    %v1303 = vld [vmem:[%s8 + $0x10] sm:$0xff]
    %v1304 = vld [vmem:[%s8 + $0x18] sm:$0xff]
    %v1305 = vld [vmem:[%s8 + $0x20] sm:$0xff]
    %v1306 = vld [vmem:[%s8 + $0x28] sm:$0xff]
    %v1307 = vld [vmem:[%s8 + $0x30] sm:$0xff]
    %v1308 = vld [vmem:[%s8 + $0x38] sm:$0xff]
    %v1309 = vld [vmem:[%s8 + $0x40] sm:$0xff]
    %v1310 = vld [vmem:[%s8 + $0x48] sm:$0xff]
    %v1311 = vld [vmem:[%s8 + $0x50] sm:$0xff]
    %v1312 = vld [vmem:[%s8 + $0x58] sm:$0xff]
    %v1313 = vld [vmem:[%s8 + $0x60] sm:$0xff]
    %v1314 = vld [vmem:[%s8 + $0x68] sm:$0xff]
    %v1315 = vld [vmem:[%s8 + $0x70] sm:$0xff]
    %v1316 = vld [vmem:[%s8 + $0x78] sm:$0xff]
    %v1317 = vld [vmem:[%s8 + $0x80] sm:$0xff]
    %v1318 = vld [vmem:[%s8 + $0x88] sm:$0xff]
    %v1319 = vld [vmem:[%s8 + $0x90] sm:$0xff]
    %v1320 = vld [vmem:[%s8 + $0x98] sm:$0xff]
    %v1321 = vld [vmem:[%s8 + $0xa0] sm:$0xff]
    %v1322 = vld [vmem:[%s8 + $0xa8] sm:$0xff]
    %v1323 = vld [vmem:[%s8 + $0xb0] sm:$0xff]
    %v1324 = vld [vmem:[%s8 + $0xb8] sm:$0xff]
    %v1325 = vld [vmem:[%s8 + $0xc0] sm:$0xff]
    %v1326 = vld [vmem:[%s8 + $0xc8] sm:$0xff]
    %v1327 = vld [vmem:[%s8 + $0xd0] sm:$0xff]
    %v1328 = vld [vmem:[%s8 + $0xd8] sm:$0xff]
    %v1329 = vld [vmem:[%s8 + $0xe0] sm:$0xff]
    %v1330 = vld [vmem:[%s8 + $0xe8] sm:$0xff]
    %v1331 = vld [vmem:[%s8 + $0xf0] sm:$0xff]
    %v1332 = vld [vmem:[%s8 + $0xf8] sm:$0xff]
    %v1333 = vld [vmem:[%s8 + $0x100] sm:$0xff]
    %v1334 = vld [vmem:[%s8 + $0x108] sm:$0xff]
    %v1335 = vld [vmem:[%s8 + $0x110] sm:$0xff]
    %v1336 = vld [vmem:[%s8 + $0x118] sm:$0xff]
    %v1337 = vld [vmem:[%s8 + $0x120] sm:$0xff]
    %v1338 = vld [vmem:[%s8 + $0x128] sm:$0xff]
    %v1339 = vld [vmem:[%s8 + $0x130] sm:$0xff]
    %v1340 = vld [vmem:[%s8 + $0x138] sm:$0xff]
    %v1341 = vld [vmem:[%s8 + $0x140] sm:$0xff]
    %v1342 = vld [vmem:[%s8 + $0x148] sm:$0xff]
    %v1343 = vld [vmem:[%s8 + $0x150] sm:$0xff]
    %v1344 = vld [vmem:[%s8 + $0x158] sm:$0xff]
    %v1345 = vld [vmem:[%s8 + $0x160] sm:$0xff]
    %v1346 = vld [vmem:[%s8 + $0x168] sm:$0xff]
    %v1347 = vld [vmem:[%s8 + $0x170] sm:$0xff]
    %v1348 = vld [vmem:[%s8 + $0x178] sm:$0xff]
    %v1349 = vld [vmem:[%s8 + $0x180] sm:$0xff]
    %v1350 = vld [vmem:[%s8 + $0x188] sm:$0xff]
    %v1351 = vld [vmem:[%s8 + $0x190] sm:$0xff]
    %v1352 = vld [vmem:[%s8 + $0x198] sm:$0xff]
    %v1353 = vld [vmem:[%s8 + $0x1a0] sm:$0xff]
    %v1354 = vld [vmem:[%s8 + $0x1a8] sm:$0xff]
    %v1355 = vld [vmem:[%s8 + $0x1b0] sm:$0xff]
    %v1356 = vld [vmem:[%s8 + $0x1b8] sm:$0xff]
    %v1357 = vld [vmem:[%s8 + $0x1c0] sm:$0xff]
    %v1358 = vld [vmem:[%s8 + $0x1c8] sm:$0xff]
    %v1359 = vld [vmem:[%s8 + $0x1d0] sm:$0xff]
    %v1360 = vld [vmem:[%s8 + $0x1d8] sm:$0xff]
    %v1361 = vld [vmem:[%s8 + $0x1e0] sm:$0xff]
    %v1362 = vld [vmem:[%s8 + $0x1e8] sm:$0xff]
    %v1363 = vld [vmem:[%s8 + $0x1f0] sm:$0xff]
    %v1364 = vld [vmem:[%s8 + $0x1f8] sm:$0xff]
    %v1365 = vld [vmem:[%s9] sm:$0x3]
    %v1367 = vlaneseq
    %v1368 = vshrl.u32 %v1367, 7
    %v1369 = vsub.s32 0, %v1368
    %v1370 = vrot.slane %v1365, %v1369
    %v1371 = vlaneseq
    %v1372 = vshrl.u32 %v1371, 7
    %v1373 = vsub.s32 1, %v1372
    %v1374 = vrot.slane %v1365, %v1373
    %v1441 = vunpack.c.l.b16 %v1301
    %v1442 = vunpack.c.h.b16 %v1301
    %v1443 = vunpack.c.l.b16 %v1302
    %v1444 = vunpack.c.h.b16 %v1302
    %v1445 = vunpack.c.l.b16 %v1303
    %v1446 = vunpack.c.h.b16 %v1303
    %v1447 = vunpack.c.l.b16 %v1304
    %v1448 = vunpack.c.h.b16 %v1304
    %v1449 = vunpack.c.l.b16 %v1305
    %v1450 = vunpack.c.h.b16 %v1305
    %v1451 = vunpack.c.l.b16 %v1306
    %v1452 = vunpack.c.h.b16 %v1306
    %v1453 = vunpack.c.l.b16 %v1307
    %v1454 = vunpack.c.h.b16 %v1307
    %v1455 = vunpack.c.l.b16 %v1308
    %v1456 = vunpack.c.h.b16 %v1308
    %v1457 = vunpack.c.l.b16 %v1309
    %v1458 = vunpack.c.h.b16 %v1309
    %v1459 = vunpack.c.l.b16 %v1310
    %v1460 = vunpack.c.h.b16 %v1310
    %v1461 = vunpack.c.l.b16 %v1311
    %v1462 = vunpack.c.h.b16 %v1311
    %v1463 = vunpack.c.l.b16 %v1312
    %v1464 = vunpack.c.h.b16 %v1312
    %v1465 = vunpack.c.l.b16 %v1313
    %v1466 = vunpack.c.h.b16 %v1313
    %v1467 = vunpack.c.l.b16 %v1314
    %v1468 = vunpack.c.h.b16 %v1314
    %v1469 = vunpack.c.l.b16 %v1315
    %v1470 = vunpack.c.h.b16 %v1315
    %v1471 = vunpack.c.l.b16 %v1316
    %v1472 = vunpack.c.h.b16 %v1316
    %v1473 = vunpack.c.l.b16 %v1317
    %v1474 = vunpack.c.h.b16 %v1317
    %v1475 = vunpack.c.l.b16 %v1318
    %v1476 = vunpack.c.h.b16 %v1318
    %v1477 = vunpack.c.l.b16 %v1319
    %v1478 = vunpack.c.h.b16 %v1319
    %v1479 = vunpack.c.l.b16 %v1320
    %v1480 = vunpack.c.h.b16 %v1320
    %v1481 = vunpack.c.l.b16 %v1321
    %v1482 = vunpack.c.h.b16 %v1321
    %v1483 = vunpack.c.l.b16 %v1322
    %v1484 = vunpack.c.h.b16 %v1322
    %v1485 = vunpack.c.l.b16 %v1323
    %v1486 = vunpack.c.h.b16 %v1323
    %v1487 = vunpack.c.l.b16 %v1324
    %v1488 = vunpack.c.h.b16 %v1324
    %v1489 = vunpack.c.l.b16 %v1325
    %v1490 = vunpack.c.h.b16 %v1325
    %v1491 = vunpack.c.l.b16 %v1326
    %v1492 = vunpack.c.h.b16 %v1326
    %v1493 = vunpack.c.l.b16 %v1327
    %v1494 = vunpack.c.h.b16 %v1327
    %v1495 = vunpack.c.l.b16 %v1328
    %v1496 = vunpack.c.h.b16 %v1328
    %v1497 = vunpack.c.l.b16 %v1329
    %v1498 = vunpack.c.h.b16 %v1329
    %v1499 = vunpack.c.l.b16 %v1330
    %v1500 = vunpack.c.h.b16 %v1330
    %v1501 = vunpack.c.l.b16 %v1331
    %v1502 = vunpack.c.h.b16 %v1331
    %v1503 = vunpack.c.l.b16 %v1332
    %v1504 = vunpack.c.h.b16 %v1332
    %v1505 = vunpack.c.l.b16 %v1333
    %v1506 = vunpack.c.h.b16 %v1333
    %v1507 = vunpack.c.l.b16 %v1334
    %v1508 = vunpack.c.h.b16 %v1334
    %v1509 = vunpack.c.l.b16 %v1335
    %v1510 = vunpack.c.h.b16 %v1335
    %v1511 = vunpack.c.l.b16 %v1336
    %v1512 = vunpack.c.h.b16 %v1336
    %v1513 = vunpack.c.l.b16 %v1337
    %v1514 = vunpack.c.h.b16 %v1337
    %v1515 = vunpack.c.l.b16 %v1338
    %v1516 = vunpack.c.h.b16 %v1338
    %v1517 = vunpack.c.l.b16 %v1339
    %v1518 = vunpack.c.h.b16 %v1339
    %v1519 = vunpack.c.l.b16 %v1340
    %v1520 = vunpack.c.h.b16 %v1340
    %v1521 = vunpack.c.l.b16 %v1341
    %v1522 = vunpack.c.h.b16 %v1341
    %v1523 = vunpack.c.l.b16 %v1342
    %v1524 = vunpack.c.h.b16 %v1342
    %v1525 = vunpack.c.l.b16 %v1343
    %v1526 = vunpack.c.h.b16 %v1343
    %v1527 = vunpack.c.l.b16 %v1344
    %v1528 = vunpack.c.h.b16 %v1344
    %v1529 = vunpack.c.l.b16 %v1345
    %v1530 = vunpack.c.h.b16 %v1345
    %v1531 = vunpack.c.l.b16 %v1346
    %v1532 = vunpack.c.h.b16 %v1346
    %v1533 = vunpack.c.l.b16 %v1347
    %v1534 = vunpack.c.h.b16 %v1347
    %v1535 = vunpack.c.l.b16 %v1348
    %v1536 = vunpack.c.h.b16 %v1348
    %v1537 = vunpack.c.l.b16 %v1349
    %v1538 = vunpack.c.h.b16 %v1349
    %v1539 = vunpack.c.l.b16 %v1350
    %v1540 = vunpack.c.h.b16 %v1350
    %v1541 = vunpack.c.l.b16 %v1351
    %v1542 = vunpack.c.h.b16 %v1351
    %v1543 = vunpack.c.l.b16 %v1352
    %v1544 = vunpack.c.h.b16 %v1352
    %v1545 = vunpack.c.l.b16 %v1353
    %v1546 = vunpack.c.h.b16 %v1353
    %v1547 = vunpack.c.l.b16 %v1354
    %v1548 = vunpack.c.h.b16 %v1354
    %v1549 = vunpack.c.l.b16 %v1355
    %v1550 = vunpack.c.h.b16 %v1355
    %v1551 = vunpack.c.l.b16 %v1356
    %v1552 = vunpack.c.h.b16 %v1356
    %v1553 = vunpack.c.l.b16 %v1357
    %v1554 = vunpack.c.h.b16 %v1357
    %v1555 = vunpack.c.l.b16 %v1358
    %v1556 = vunpack.c.h.b16 %v1358
    %v1557 = vunpack.c.l.b16 %v1359
    %v1558 = vunpack.c.h.b16 %v1359
    %v1559 = vunpack.c.l.b16 %v1360
    %v1560 = vunpack.c.h.b16 %v1360
    %v1561 = vunpack.c.l.b16 %v1361
    %v1562 = vunpack.c.h.b16 %v1361
    %v1563 = vunpack.c.l.b16 %v1362
    %v1564 = vunpack.c.h.b16 %v1362
    %v1565 = vunpack.c.l.b16 %v1363
    %v1566 = vunpack.c.h.b16 %v1363
    %v1567 = vunpack.c.l.b16 %v1364
    %v1568 = vunpack.c.h.b16 %v1364
    %v1569 = vpack.c.b16 %v1443, %v1441
    %v1570 = vpack.c.b16 %v1444, %v1442
    %v1571 = vpack.c.b16 %v1447, %v1445
    %v1572 = vpack.c.b16 %v1448, %v1446
    %v1573 = vpack.c.b16 %v1451, %v1449
    %v1574 = vpack.c.b16 %v1452, %v1450
    %v1575 = vpack.c.b16 %v1455, %v1453
    %v1576 = vpack.c.b16 %v1456, %v1454
    %v1577 = vpack.c.b16 %v1459, %v1457
    %v1578 = vpack.c.b16 %v1460, %v1458
    %v1579 = vpack.c.b16 %v1463, %v1461
    %v1580 = vpack.c.b16 %v1464, %v1462
    %v1581 = vpack.c.b16 %v1467, %v1465
    %v1582 = vpack.c.b16 %v1468, %v1466
    %v1583 = vpack.c.b16 %v1471, %v1469
    %v1584 = vpack.c.b16 %v1472, %v1470
    %v1585 = vpack.c.b16 %v1475, %v1473
    %v1586 = vpack.c.b16 %v1476, %v1474
    %v1587 = vpack.c.b16 %v1479, %v1477
    %v1588 = vpack.c.b16 %v1480, %v1478
    %v1589 = vpack.c.b16 %v1483, %v1481
    %v1590 = vpack.c.b16 %v1484, %v1482
    %v1591 = vpack.c.b16 %v1487, %v1485
    %v1592 = vpack.c.b16 %v1488, %v1486
    %v1593 = vpack.c.b16 %v1491, %v1489
    %v1594 = vpack.c.b16 %v1492, %v1490
    %v1595 = vpack.c.b16 %v1495, %v1493
    %v1596 = vpack.c.b16 %v1496, %v1494
    %v1597 = vpack.c.b16 %v1499, %v1497
    %v1598 = vpack.c.b16 %v1500, %v1498
    %v1599 = vpack.c.b16 %v1503, %v1501
    %v1600 = vpack.c.b16 %v1504, %v1502
    %v1601 = vpack.c.b16 %v1507, %v1505
    %v1602 = vpack.c.b16 %v1508, %v1506
    %v1603 = vpack.c.b16 %v1511, %v1509
    %v1604 = vpack.c.b16 %v1512, %v1510
    %v1605 = vpack.c.b16 %v1515, %v1513
    %v1606 = vpack.c.b16 %v1516, %v1514
    %v1607 = vpack.c.b16 %v1519, %v1517
    %v1608 = vpack.c.b16 %v1520, %v1518
    %v1609 = vpack.c.b16 %v1523, %v1521
    %v1610 = vpack.c.b16 %v1524, %v1522
    %v1611 = vpack.c.b16 %v1527, %v1525
    %v1612 = vpack.c.b16 %v1528, %v1526
    %v1613 = vpack.c.b16 %v1531, %v1529
    %v1614 = vpack.c.b16 %v1532, %v1530
    %v1615 = vpack.c.b16 %v1535, %v1533
    %v1616 = vpack.c.b16 %v1536, %v1534
    %v1617 = vpack.c.b16 %v1539, %v1537
    %v1618 = vpack.c.b16 %v1540, %v1538
    %v1619 = vpack.c.b16 %v1543, %v1541
    %v1620 = vpack.c.b16 %v1544, %v1542
    %v1621 = vpack.c.b16 %v1547, %v1545
    %v1622 = vpack.c.b16 %v1548, %v1546
    %v1623 = vpack.c.b16 %v1551, %v1549
    %v1624 = vpack.c.b16 %v1552, %v1550
    %v1625 = vpack.c.b16 %v1555, %v1553
    %v1626 = vpack.c.b16 %v1556, %v1554
    %v1627 = vpack.c.b16 %v1559, %v1557
    %v1628 = vpack.c.b16 %v1560, %v1558
    %v1629 = vpack.c.b16 %v1563, %v1561
    %v1630 = vpack.c.b16 %v1564, %v1562
    %v1631 = vpack.c.b16 %v1567, %v1565
    %v1632 = vpack.c.b16 %v1568, %v1566
    %1697 = vmatprep.subr.bf16.mxu0 %v1570
    %1698 = vmatpush1.bf16.msra.mxu0 %v1569
    %1699 = vmatprep.subr.bf16.mxu0 %v1572
    %1700 = vmatpush1.bf16.msra.mxu0 %v1571
    %1701 = vmatprep.subr.bf16.mxu0 %v1574
    %1702 = vmatpush1.bf16.msra.mxu0 %v1573
    %1703 = vmatprep.subr.bf16.mxu0 %v1576
    %1704 = vmatpush1.bf16.msra.mxu0 %v1575
    %1705 = vmatprep.subr.bf16.mxu0 %v1578
    %1706 = vmatpush1.bf16.msra.mxu0 %v1577
    %1707 = vmatprep.subr.bf16.mxu0 %v1580
    %1708 = vmatpush1.bf16.msra.mxu0 %v1579
    %1709 = vmatprep.subr.bf16.mxu0 %v1582
    %1710 = vmatpush1.bf16.msra.mxu0 %v1581
    %1711 = vmatprep.subr.bf16.mxu0 %v1584
    %1712 = vmatpush1.bf16.msra.mxu0 %v1583
    %1713 = vmatprep.subr.bf16.mxu0 %v1586
    %1714 = vmatpush1.bf16.msra.mxu0 %v1585
    %1715 = vmatprep.subr.bf16.mxu0 %v1588
    %1716 = vmatpush1.bf16.msra.mxu0 %v1587
    %1717 = vmatprep.subr.bf16.mxu0 %v1590
    %1718 = vmatpush1.bf16.msra.mxu0 %v1589
    %1719 = vmatprep.subr.bf16.mxu0 %v1592
    %1720 = vmatpush1.bf16.msra.mxu0 %v1591
    %1721 = vmatprep.subr.bf16.mxu0 %v1594
    %1722 = vmatpush1.bf16.msra.mxu0 %v1593
    %1723 = vmatprep.subr.bf16.mxu0 %v1596
    %1724 = vmatpush1.bf16.msra.mxu0 %v1595
    %1725 = vmatprep.subr.bf16.mxu0 %v1598
    %1726 = vmatpush1.bf16.msra.mxu0 %v1597
    %1727 = vmatprep.subr.bf16.mxu0 %v1600
    %1728 = vmatpush1.bf16.msra.mxu0 %v1599
    %1729 = vmatprep.mubr.bf16.mxu0 %v1298
    %1730 = vmatmul.mubr.bf16.gmra.mrb[0].mxu0 %v1297
    %v1731 = vpop.f32.mrb[0].mxu0
    %v1732 = vadd.f32 %v1370, %v1731
    %v1733 = vpop.f32.mrb[0].mxu0
    %v1734 = vadd.f32 %v1374, %v1733
    %v1735 = vpop.f32.mrb[0].mxu0
    %v1736 = vadd.f32 %v1370, %v1735
    %v1737 = vpop.f32.mrb[0].mxu0
    %v1738 = vadd.f32 %v1374, %v1737
    %1739 = vdwg.mxu0
    %1740 = vmatprep.subr.bf16.mxu0 %v1602
    %1741 = vmatpush1.bf16.msra.mxu0 %v1601
    %1742 = vmatprep.subr.bf16.mxu0 %v1604
    %1743 = vmatpush1.bf16.msra.mxu0 %v1603
    %1744 = vmatprep.subr.bf16.mxu0 %v1606
    %1745 = vmatpush1.bf16.msra.mxu0 %v1605
    %1746 = vmatprep.subr.bf16.mxu0 %v1608
    %1747 = vmatpush1.bf16.msra.mxu0 %v1607
    %1748 = vmatprep.subr.bf16.mxu0 %v1610
    %1749 = vmatpush1.bf16.msra.mxu0 %v1609
    %1750 = vmatprep.subr.bf16.mxu0 %v1612
    %1751 = vmatpush1.bf16.msra.mxu0 %v1611
    %1752 = vmatprep.subr.bf16.mxu0 %v1614
    %1753 = vmatpush1.bf16.msra.mxu0 %v1613
    %1754 = vmatprep.subr.bf16.mxu0 %v1616
    %1755 = vmatpush1.bf16.msra.mxu0 %v1615
    %1756 = vmatprep.subr.bf16.mxu0 %v1618
    %1757 = vmatpush1.bf16.msra.mxu0 %v1617
    %1758 = vmatprep.subr.bf16.mxu0 %v1620
    %1759 = vmatpush1.bf16.msra.mxu0 %v1619
    %1760 = vmatprep.subr.bf16.mxu0 %v1622
    %1761 = vmatpush1.bf16.msra.mxu0 %v1621
    %1762 = vmatprep.subr.bf16.mxu0 %v1624
    %1763 = vmatpush1.bf16.msra.mxu0 %v1623
    %1764 = vmatprep.subr.bf16.mxu0 %v1626
    %1765 = vmatpush1.bf16.msra.mxu0 %v1625
    %1766 = vmatprep.subr.bf16.mxu0 %v1628
    %1767 = vmatpush1.bf16.msra.mxu0 %v1627
    %1768 = vmatprep.subr.bf16.mxu0 %v1630
    %1769 = vmatpush1.bf16.msra.mxu0 %v1629
    %1770 = vmatprep.subr.bf16.mxu0 %v1632
    %1771 = vmatpush1.bf16.msra.mxu0 %v1631
    %1772 = vmatprep.mubr.bf16.mxu0 %v1300
    %1773 = vmatmul.mubr.bf16.gmra.mrb[0].mxu0 %v1299
    %v1774 = vpop.f32.mrb[0].mxu0
    %v1775 = vadd.f32 %v1732, %v1774
    %v1776 = vpop.f32.mrb[0].mxu0
    %v1777 = vadd.f32 %v1734, %v1776
    %v1778 = vpop.f32.mrb[0].mxu0
    %v1779 = vadd.f32 %v1736, %v1778
    %v1780 = vpop.f32.mrb[0].mxu0
    %v1781 = vadd.f32 %v1738, %v1780
    %1782 = vdwg.mxu0
    %vm1783 = vcmp.ge.f32.partialorder %v1775, 0.0
    %vm1784 = vcmp.ge.f32.partialorder %v1777, 0.0
    %vm1785 = vcmp.ge.f32.partialorder %v1779, 0.0
    %vm1786 = vcmp.ge.f32.partialorder %v1781, 0.0
    %v1787 = vmul.f32 %v1775, 0.2
    %v1788 = vmul.f32 %v1777, 0.2
    %v1789 = vmul.f32 %v1779, 0.2
    %v1790 = vmul.f32 %v1781, 0.2
    %v1791 = vsel %vm1783, %v1775, %v1787
    %v1792 = vsel %vm1784, %v1777, %v1788
    %v1793 = vsel %vm1785, %v1779, %v1789
    %v1794 = vsel %vm1786, %v1781, %v1790
    %v1795 = vpack.c.bf16 %v1793, %v1791
    %v1796 = vpack.c.bf16 %v1794, %v1792
    %v1797 = vld [vmem:[%s10] sm:$0xff]
    %v1798 = vld [vmem:[%s10 + $0x8] sm:$0xff]
    %v1799 = vld [vmem:[%s10 + $0x10] sm:$0xff]
    %v1800 = vld [vmem:[%s10 + $0x18] sm:$0xff]
    %v1801 = vld [vmem:[%s10 + $0x20] sm:$0xff]
    %v1802 = vld [vmem:[%s10 + $0x28] sm:$0xff]
    %v1803 = vld [vmem:[%s10 + $0x30] sm:$0xff]
    %v1804 = vld [vmem:[%s10 + $0x38] sm:$0xff]
    %v1805 = vld [vmem:[%s10 + $0x40] sm:$0xff]
    %v1806 = vld [vmem:[%s10 + $0x48] sm:$0xff]
    %v1807 = vld [vmem:[%s10 + $0x50] sm:$0xff]
    %v1808 = vld [vmem:[%s10 + $0x58] sm:$0xff]
    %v1809 = vld [vmem:[%s10 + $0x60] sm:$0xff]
    %v1810 = vld [vmem:[%s10 + $0x68] sm:$0xff]
    %v1811 = vld [vmem:[%s10 + $0x70] sm:$0xff]
    %v1812 = vld [vmem:[%s10 + $0x78] sm:$0xff]
    %v1813 = vld [vmem:[%s10 + $0x80] sm:$0xff]
    %v1814 = vld [vmem:[%s10 + $0x88] sm:$0xff]
    %v1815 = vld [vmem:[%s10 + $0x90] sm:$0xff]
    %v1816 = vld [vmem:[%s10 + $0x98] sm:$0xff]
    %v1817 = vld [vmem:[%s10 + $0xa0] sm:$0xff]
    %v1818 = vld [vmem:[%s10 + $0xa8] sm:$0xff]
    %v1819 = vld [vmem:[%s10 + $0xb0] sm:$0xff]
    %v1820 = vld [vmem:[%s10 + $0xb8] sm:$0xff]
    %v1821 = vld [vmem:[%s10 + $0xc0] sm:$0xff]
    %v1822 = vld [vmem:[%s10 + $0xc8] sm:$0xff]
    %v1823 = vld [vmem:[%s10 + $0xd0] sm:$0xff]
    %v1824 = vld [vmem:[%s10 + $0xd8] sm:$0xff]
    %v1825 = vld [vmem:[%s10 + $0xe0] sm:$0xff]
    %v1826 = vld [vmem:[%s10 + $0xe8] sm:$0xff]
    %v1827 = vld [vmem:[%s10 + $0xf0] sm:$0xff]
    %v1828 = vld [vmem:[%s10 + $0xf8] sm:$0xff]
    %v1829 = vld [vmem:[%s11] sm:$0x3]
    %v1831 = vlaneseq
    %v1832 = vshrl.u32 %v1831, 7
    %v1833 = vsub.s32 0, %v1832
    %v1834 = vrot.slane %v1829, %v1833
    %v1835 = vlaneseq
    %v1836 = vshrl.u32 %v1835, 7
    %v1837 = vsub.s32 1, %v1836
    %v1838 = vrot.slane %v1829, %v1837
    %v1873 = vunpack.c.l.b16 %v1797
    %v1874 = vunpack.c.h.b16 %v1797
    %v1875 = vunpack.c.l.b16 %v1798
    %v1876 = vunpack.c.h.b16 %v1798
    %v1877 = vunpack.c.l.b16 %v1799
    %v1878 = vunpack.c.h.b16 %v1799
    %v1879 = vunpack.c.l.b16 %v1800
    %v1880 = vunpack.c.h.b16 %v1800
    %v1881 = vunpack.c.l.b16 %v1801
    %v1882 = vunpack.c.h.b16 %v1801
    %v1883 = vunpack.c.l.b16 %v1802
    %v1884 = vunpack.c.h.b16 %v1802
    %v1885 = vunpack.c.l.b16 %v1803
    %v1886 = vunpack.c.h.b16 %v1803
    %v1887 = vunpack.c.l.b16 %v1804
    %v1888 = vunpack.c.h.b16 %v1804
    %v1889 = vunpack.c.l.b16 %v1805
    %v1890 = vunpack.c.h.b16 %v1805
    %v1891 = vunpack.c.l.b16 %v1806
    %v1892 = vunpack.c.h.b16 %v1806
    %v1893 = vunpack.c.l.b16 %v1807
    %v1894 = vunpack.c.h.b16 %v1807
    %v1895 = vunpack.c.l.b16 %v1808
    %v1896 = vunpack.c.h.b16 %v1808
    %v1897 = vunpack.c.l.b16 %v1809
    %v1898 = vunpack.c.h.b16 %v1809
    %v1899 = vunpack.c.l.b16 %v1810
    %v1900 = vunpack.c.h.b16 %v1810
    %v1901 = vunpack.c.l.b16 %v1811
    %v1902 = vunpack.c.h.b16 %v1811
    %v1903 = vunpack.c.l.b16 %v1812
    %v1904 = vunpack.c.h.b16 %v1812
    %v1905 = vunpack.c.l.b16 %v1813
    %v1906 = vunpack.c.h.b16 %v1813
    %v1907 = vunpack.c.l.b16 %v1814
    %v1908 = vunpack.c.h.b16 %v1814
    %v1909 = vunpack.c.l.b16 %v1815
    %v1910 = vunpack.c.h.b16 %v1815
    %v1911 = vunpack.c.l.b16 %v1816
    %v1912 = vunpack.c.h.b16 %v1816
    %v1913 = vunpack.c.l.b16 %v1817
    %v1914 = vunpack.c.h.b16 %v1817
    %v1915 = vunpack.c.l.b16 %v1818
    %v1916 = vunpack.c.h.b16 %v1818
    %v1917 = vunpack.c.l.b16 %v1819
    %v1918 = vunpack.c.h.b16 %v1819
    %v1919 = vunpack.c.l.b16 %v1820
    %v1920 = vunpack.c.h.b16 %v1820
    %v1921 = vunpack.c.l.b16 %v1821
    %v1922 = vunpack.c.h.b16 %v1821
    %v1923 = vunpack.c.l.b16 %v1822
    %v1924 = vunpack.c.h.b16 %v1822
    %v1925 = vunpack.c.l.b16 %v1823
    %v1926 = vunpack.c.h.b16 %v1823
    %v1927 = vunpack.c.l.b16 %v1824
    %v1928 = vunpack.c.h.b16 %v1824
    %v1929 = vunpack.c.l.b16 %v1825
    %v1930 = vunpack.c.h.b16 %v1825
    %v1931 = vunpack.c.l.b16 %v1826
    %v1932 = vunpack.c.h.b16 %v1826
    %v1933 = vunpack.c.l.b16 %v1827
    %v1934 = vunpack.c.h.b16 %v1827
    %v1935 = vunpack.c.l.b16 %v1828
    %v1936 = vunpack.c.h.b16 %v1828
    %v1937 = vpack.c.b16 %v1875, %v1873
    %v1938 = vpack.c.b16 %v1876, %v1874
    %v1939 = vpack.c.b16 %v1879, %v1877
    %v1940 = vpack.c.b16 %v1880, %v1878
    %v1941 = vpack.c.b16 %v1883, %v1881
    %v1942 = vpack.c.b16 %v1884, %v1882
    %v1943 = vpack.c.b16 %v1887, %v1885
    %v1944 = vpack.c.b16 %v1888, %v1886
    %v1945 = vpack.c.b16 %v1891, %v1889
    %v1946 = vpack.c.b16 %v1892, %v1890
    %v1947 = vpack.c.b16 %v1895, %v1893
    %v1948 = vpack.c.b16 %v1896, %v1894
    %v1949 = vpack.c.b16 %v1899, %v1897
    %v1950 = vpack.c.b16 %v1900, %v1898
    %v1951 = vpack.c.b16 %v1903, %v1901
    %v1952 = vpack.c.b16 %v1904, %v1902
    %v1953 = vpack.c.b16 %v1907, %v1905
    %v1954 = vpack.c.b16 %v1908, %v1906
    %v1955 = vpack.c.b16 %v1911, %v1909
    %v1956 = vpack.c.b16 %v1912, %v1910
    %v1957 = vpack.c.b16 %v1915, %v1913
    %v1958 = vpack.c.b16 %v1916, %v1914
    %v1959 = vpack.c.b16 %v1919, %v1917
    %v1960 = vpack.c.b16 %v1920, %v1918
    %v1961 = vpack.c.b16 %v1923, %v1921
    %v1962 = vpack.c.b16 %v1924, %v1922
    %v1963 = vpack.c.b16 %v1927, %v1925
    %v1964 = vpack.c.b16 %v1928, %v1926
    %v1965 = vpack.c.b16 %v1931, %v1929
    %v1966 = vpack.c.b16 %v1932, %v1930
    %v1967 = vpack.c.b16 %v1935, %v1933
    %v1968 = vpack.c.b16 %v1936, %v1934
    %2001 = vmatprep.subr.bf16.mxu0 %v1938
    %2002 = vmatpush1.bf16.msra.mxu0 %v1937
    %2003 = vmatprep.subr.bf16.mxu0 %v1940
    %2004 = vmatpush1.bf16.msra.mxu0 %v1939
    %2005 = vmatprep.subr.bf16.mxu0 %v1942
    %2006 = vmatpush1.bf16.msra.mxu0 %v1941
    %2007 = vmatprep.subr.bf16.mxu0 %v1944
    %2008 = vmatpush1.bf16.msra.mxu0 %v1943
    %2009 = vmatprep.subr.bf16.mxu0 %v1946
    %2010 = vmatpush1.bf16.msra.mxu0 %v1945
    %2011 = vmatprep.subr.bf16.mxu0 %v1948
    %2012 = vmatpush1.bf16.msra.mxu0 %v1947
    %2013 = vmatprep.subr.bf16.mxu0 %v1950
    %2014 = vmatpush1.bf16.msra.mxu0 %v1949
    %2015 = vmatprep.subr.bf16.mxu0 %v1952
    %2016 = vmatpush1.bf16.msra.mxu0 %v1951
    %2017 = vmatprep.subr.bf16.mxu0 %v1954
    %2018 = vmatpush1.bf16.msra.mxu0 %v1953
    %2019 = vmatprep.subr.bf16.mxu0 %v1956
    %2020 = vmatpush1.bf16.msra.mxu0 %v1955
    %2021 = vmatprep.subr.bf16.mxu0 %v1958
    %2022 = vmatpush1.bf16.msra.mxu0 %v1957
    %2023 = vmatprep.subr.bf16.mxu0 %v1960
    %2024 = vmatpush1.bf16.msra.mxu0 %v1959
    %2025 = vmatprep.subr.bf16.mxu0 %v1962
    %2026 = vmatpush1.bf16.msra.mxu0 %v1961
    %2027 = vmatprep.subr.bf16.mxu0 %v1964
    %2028 = vmatpush1.bf16.msra.mxu0 %v1963
    %2029 = vmatprep.subr.bf16.mxu0 %v1966
    %2030 = vmatpush1.bf16.msra.mxu0 %v1965
    %2031 = vmatprep.subr.bf16.mxu0 %v1968
    %2032 = vmatpush1.bf16.msra.mxu0 %v1967
    %2033 = vmatprep.mubr.bf16.mxu0 %v1796
    %2034 = vmatmul.mubr.bf16.gmra.mrb[0].mxu0 %v1795
    %v2035 = vpop.f32.mrb[0].mxu0
    %v2036 = vadd.f32 %v1834, %v2035
    %v2037 = vpop.f32.mrb[0].mxu0
    %v2038 = vadd.f32 %v1838, %v2037
    %v2039 = vpop.f32.mrb[0].mxu0
    %v2040 = vadd.f32 %v1834, %v2039
    %v2041 = vpop.f32.mrb[0].mxu0
    %v2042 = vadd.f32 %v1838, %v2041
    %2043 = vdwg.mxu0
    %vm2044 = vcmp.ge.f32.partialorder %v2036, 0.0
    %vm2045 = vcmp.ge.f32.partialorder %v2038, 0.0
    %vm2046 = vcmp.ge.f32.partialorder %v2040, 0.0
    %vm2047 = vcmp.ge.f32.partialorder %v2042, 0.0
    %v2048 = vmul.f32 %v2036, 0.2
    %v2049 = vmul.f32 %v2038, 0.2
    %v2050 = vmul.f32 %v2040, 0.2
    %v2051 = vmul.f32 %v2042, 0.2
    %v2052 = vsel %vm2044, %v2036, %v2048
    %v2053 = vsel %vm2045, %v2038, %v2049
    %v2054 = vsel %vm2046, %v2040, %v2050
    %v2055 = vsel %vm2047, %v2042, %v2051
    %v2056 = vpack.c.bf16 %v2054, %v2052
    %v2057 = vpack.c.bf16 %v2055, %v2053
    %v2058 = vld [vmem:[%s12] sm:$0xf]
    %v2059 = vld [vmem:[%s12 + $0x4] sm:$0xf]
    %v2060 = vld [vmem:[%s12 + $0x8] sm:$0xf]
    %v2061 = vld [vmem:[%s12 + $0xc] sm:$0xf]
    %v2062 = vld [vmem:[%s12 + $0x10] sm:$0xf]
    %v2063 = vld [vmem:[%s12 + $0x14] sm:$0xf]
    %v2064 = vld [vmem:[%s12 + $0x18] sm:$0xf]
    %v2065 = vld [vmem:[%s12 + $0x1c] sm:$0xf]
    %v2066 = vld [vmem:[%s12 + $0x20] sm:$0xf]
    %v2067 = vld [vmem:[%s12 + $0x24] sm:$0xf]
    %v2068 = vld [vmem:[%s12 + $0x28] sm:$0xf]
    %v2069 = vld [vmem:[%s12 + $0x2c] sm:$0xf]
    %v2070 = vld [vmem:[%s12 + $0x30] sm:$0xf]
    %v2071 = vld [vmem:[%s12 + $0x34] sm:$0xf]
    %v2072 = vld [vmem:[%s12 + $0x38] sm:$0xf]
    %v2073 = vld [vmem:[%s12 + $0x3c] sm:$0xf]
    %v2074 = vld [vmem:[%s12 + $0x40] sm:$0xf]
    %v2075 = vld [vmem:[%s12 + $0x44] sm:$0xf]
    %v2076 = vld [vmem:[%s12 + $0x48] sm:$0xf]
    %v2077 = vld [vmem:[%s12 + $0x4c] sm:$0xf]
    %v2078 = vld [vmem:[%s12 + $0x50] sm:$0xf]
    %v2079 = vld [vmem:[%s12 + $0x54] sm:$0xf]
    %v2080 = vld [vmem:[%s12 + $0x58] sm:$0xf]
    %v2081 = vld [vmem:[%s12 + $0x5c] sm:$0xf]
    %v2082 = vld [vmem:[%s12 + $0x60] sm:$0xf]
    %v2083 = vld [vmem:[%s12 + $0x64] sm:$0xf]
    %v2084 = vld [vmem:[%s12 + $0x68] sm:$0xf]
    %v2085 = vld [vmem:[%s12 + $0x6c] sm:$0xf]
    %v2086 = vld [vmem:[%s12 + $0x70] sm:$0xf]
    %v2087 = vld [vmem:[%s12 + $0x74] sm:$0xf]
    %v2088 = vld [vmem:[%s12 + $0x78] sm:$0xf]
    %v2089 = vld [vmem:[%s12 + $0x7c] sm:$0xf]
    %v2090 = vld [vmem:[%s13] sm:$0x1]
    %v2092 = vlaneseq
    %v2093 = vshrl.u32 %v2092, 7
    %v2094 = vsub.s32 0, %v2093
    %v2095 = vrot.slane %v2090, %v2094
    %v2129 = vunpack.c.l.b16 %v2058
    %v2130 = vunpack.c.l.b16 %v2059
    %v2131 = vunpack.c.l.b16 %v2060
    %v2132 = vunpack.c.l.b16 %v2061
    %v2133 = vunpack.c.l.b16 %v2062
    %v2134 = vunpack.c.l.b16 %v2063
    %v2135 = vunpack.c.l.b16 %v2064
    %v2136 = vunpack.c.l.b16 %v2065
    %v2137 = vunpack.c.l.b16 %v2066
    %v2138 = vunpack.c.l.b16 %v2067
    %v2139 = vunpack.c.l.b16 %v2068
    %v2140 = vunpack.c.l.b16 %v2069
    %v2141 = vunpack.c.l.b16 %v2070
    %v2142 = vunpack.c.l.b16 %v2071
    %v2143 = vunpack.c.l.b16 %v2072
    %v2144 = vunpack.c.l.b16 %v2073
    %v2145 = vunpack.c.l.b16 %v2074
    %v2146 = vunpack.c.l.b16 %v2075
    %v2147 = vunpack.c.l.b16 %v2076
    %v2148 = vunpack.c.l.b16 %v2077
    %v2149 = vunpack.c.l.b16 %v2078
    %v2150 = vunpack.c.l.b16 %v2079
    %v2151 = vunpack.c.l.b16 %v2080
    %v2152 = vunpack.c.l.b16 %v2081
    %v2153 = vunpack.c.l.b16 %v2082
    %v2154 = vunpack.c.l.b16 %v2083
    %v2155 = vunpack.c.l.b16 %v2084
    %v2156 = vunpack.c.l.b16 %v2085
    %v2157 = vunpack.c.l.b16 %v2086
    %v2158 = vunpack.c.l.b16 %v2087
    %v2159 = vunpack.c.l.b16 %v2088
    %v2160 = vunpack.c.l.b16 %v2089
    %v2161 = vpack.c.b16 %v2130, %v2129
    %v2162 = vpack.c.b16 %v2132, %v2131
    %v2163 = vpack.c.b16 %v2134, %v2133
    %v2164 = vpack.c.b16 %v2136, %v2135
    %v2165 = vpack.c.b16 %v2138, %v2137
    %v2166 = vpack.c.b16 %v2140, %v2139
    %v2167 = vpack.c.b16 %v2142, %v2141
    %v2168 = vpack.c.b16 %v2144, %v2143
    %v2169 = vpack.c.b16 %v2146, %v2145
    %v2170 = vpack.c.b16 %v2148, %v2147
    %v2171 = vpack.c.b16 %v2150, %v2149
    %v2172 = vpack.c.b16 %v2152, %v2151
    %v2173 = vpack.c.b16 %v2154, %v2153
    %v2174 = vpack.c.b16 %v2156, %v2155
    %v2175 = vpack.c.b16 %v2158, %v2157
    %v2176 = vpack.c.b16 %v2160, %v2159
    %2193 = vmatprep.subr.bf16.mxu0 0
    %2194 = vmatpush1.bf16.msra.mxu0 %v2161
    %2195 = vmatprep.subr.bf16.mxu0 0
    %2196 = vmatpush1.bf16.msra.mxu0 %v2162
    %2197 = vmatprep.subr.bf16.mxu0 0
    %2198 = vmatpush1.bf16.msra.mxu0 %v2163
    %2199 = vmatprep.subr.bf16.mxu0 0
    %2200 = vmatpush1.bf16.msra.mxu0 %v2164
    %2201 = vmatprep.subr.bf16.mxu0 0
    %2202 = vmatpush1.bf16.msra.mxu0 %v2165
    %2203 = vmatprep.subr.bf16.mxu0 0
    %2204 = vmatpush1.bf16.msra.mxu0 %v2166
    %2205 = vmatprep.subr.bf16.mxu0 0
    %2206 = vmatpush1.bf16.msra.mxu0 %v2167
    %2207 = vmatprep.subr.bf16.mxu0 0
    %2208 = vmatpush1.bf16.msra.mxu0 %v2168
    %2209 = vmatprep.subr.bf16.mxu0 0
    %2210 = vmatpush1.bf16.msra.mxu0 %v2169
    %2211 = vmatprep.subr.bf16.mxu0 0
    %2212 = vmatpush1.bf16.msra.mxu0 %v2170
    %2213 = vmatprep.subr.bf16.mxu0 0
    %2214 = vmatpush1.bf16.msra.mxu0 %v2171
    %2215 = vmatprep.subr.bf16.mxu0 0
    %2216 = vmatpush1.bf16.msra.mxu0 %v2172
    %2217 = vmatprep.subr.bf16.mxu0 0
    %2218 = vmatpush1.bf16.msra.mxu0 %v2173
    %2219 = vmatprep.subr.bf16.mxu0 0
    %2220 = vmatpush1.bf16.msra.mxu0 %v2174
    %2221 = vmatprep.subr.bf16.mxu0 0
    %2222 = vmatpush1.bf16.msra.mxu0 %v2175
    %2223 = vmatprep.subr.bf16.mxu0 0
    %2224 = vmatpush1.bf16.msra.mxu0 %v2176
    %2225 = vmatprep.mubr.bf16.mxu0 %v2057
    %2226 = vmatmul.mubr.bf16.gmra.mrb[0].mxu0 %v2056
    %v2227 = vpop.f32.mrb[0].mxu0
    %v2228 = vadd.f32 %v2095, %v2227
    %v2229 = vpop.f32.mrb[0].mxu0
    %v2230 = vpop.f32.mrb[0].mxu0
    %v2231 = vpop.f32.mrb[0].mxu0
    %2232 = vdwg.mxu0
    %v2233 = vmax.f32 %v2228, 0.0
    %v2234 = vsub.f32 %v2233, %v2228
    %v2235 = vand.u32 2147483647, %v2228
    %v2236 = vsub.f32 0.0, %v2235
    %v2237 = vmul.f32 %v2236, 1.442695
    %v2238 = vpow.pop %v2237
    %v2239 = vadd.f32 %v2238, 1.0
    %v2240 = vlog2.pop %v2239
    %v2241 = vmul.f32 %v2240, 0.6931472
    %v2242 = vadd.f32 %v2234, %v2241
    %vm2243 = vcmask 25600
    %v2244 = vsel %vm2243, %v2242, 0.0
    %2245 = vadd.xlane.f32.xlu0 %v2244
    %v2246 = vpop.xlane.xlu0 %2245
    %v2247 = vrot.slane %v2246, 4
    %v2248 = vadd.f32 %v2246, %v2247
    %v2249 = vrot.slane %v2248, 2
    %v2250 = vadd.f32 %v2248, %v2249
    %v2251 = vrot.slane %v2250, 1
    %v2252 = vadd.f32 %v2250, %v2251
    %s2253 = vtos %v2252
    %v2254 = vrcp.pop 8.0
    %s2255 = vtos %v2254
    %s2256 = smul.f32 %s2253, %s2255
    %s2257 = sld [smem:[#allocation3]]
    %s2258 = smul.f32 %s2256, %s2257
    %s2259 = sadd.f32 %s2258, 0.0
    %s2260 = scalar_lea.smem [#allocation6], 0
    %2261 = sst [smem:[%s2260]] %s2259
    %v2263 = vrot.slane %v2242, 2
    %v2265 = vsel %vm2243, %v2263, 0.0
    %2266 = vadd.xlane.f32.xlu0 %v2265
    %v2267 = vpop.xlane.xlu0 %2266
    %v2268 = vrot.slane %v2267, 4
    %v2269 = vadd.f32 %v2267, %v2268
    %v2270 = vrot.slane %v2269, 2
    %v2271 = vadd.f32 %v2269, %v2270
    %v2272 = vrot.slane %v2271, 1
    %v2273 = vadd.f32 %v2271, %v2272
    %s2274 = vtos %v2273
    %v2275 = vrcp.pop 8.0
    %s2276 = vtos %v2275
    %s2277 = smul.f32 %s2274, %s2276
    %s2278 = sld [smem:[#allocation3 + $0x1]]
    %s2279 = smul.f32 %s2277, %s2278
    %s2280 = sadd.f32 %s2259, %s2279
    %s2281 = scalar_lea.smem [#allocation6], 1
    %2282 = sst [smem:[%s2281]] %s2280
    %v2283 = vrot.slane %v2242, 4
    %v2285 = vsel %vm2243, %v2283, 0.0
    %2286 = vadd.xlane.f32.xlu0 %v2285
    %v2287 = vpop.xlane.xlu0 %2286
    %v2288 = vrot.slane %v2287, 4
    %v2289 = vadd.f32 %v2287, %v2288
    %v2290 = vrot.slane %v2289, 2
    %v2291 = vadd.f32 %v2289, %v2290
    %v2292 = vrot.slane %v2291, 1
    %v2293 = vadd.f32 %v2291, %v2292
    %s2294 = vtos %v2293
    %v2295 = vrcp.pop 8.0
    %s2296 = vtos %v2295
    %s2297 = smul.f32 %s2294, %s2296
    %s2298 = sld [smem:[#allocation3 + $0x2]]
    %s2299 = smul.f32 %s2297, %s2298
    %s2300 = sadd.f32 %s2280, %s2299
    %s2301 = scalar_lea.smem [#allocation6], 2
    %2302 = sst [smem:[%s2301]] %s2300
    %v2303 = vrot.slane %v2242, 6
    %v2305 = vsel %vm2243, %v2303, 0.0
    %2306 = vadd.xlane.f32.xlu0 %v2305
    %v2307 = vpop.xlane.xlu0 %2306
    %v2308 = vrot.slane %v2307, 4
    %v2309 = vadd.f32 %v2307, %v2308
    %v2310 = vrot.slane %v2309, 2
    %v2311 = vadd.f32 %v2309, %v2310
    %v2312 = vrot.slane %v2311, 1
    %v2313 = vadd.f32 %v2311, %v2312
    %s2314 = vtos %v2313
    %v2315 = vrcp.pop 8.0
    %s2316 = vtos %v2315
    %s2317 = smul.f32 %s2314, %s2316
    %s2318 = sld [smem:[#allocation3 + $0x3]]
    %s2319 = smul.f32 %s2317, %s2318
    %s2320 = sadd.f32 %s2300, %s2319
    %s2321 = scalar_lea.smem [#allocation6], 3
    %2322 = sst [smem:[%s2321]] %s2320
    %v2323 = vrcp.pop 4.0
    %s2324 = vtos %v2323
    %s2325 = smul.f32 %s2320, %s2324
    %s2326 = scalar_lea.smem [#allocation7], 0
    %2327 = sst [smem:[%s2326]] %s2325
    %s2328 = sld [smem:[#allocation2]]
    %s2329 = smul.f32 %s2325, 0.01
    %s2330 = sadd.f32 %s2328, %s2329
    %s2331 = scalar_lea.smem [#allocation9], 0
    %2332 = sst [smem:[%s2331]] %s2330
    // Predicated region
    $region62: #{gan_loss_fn.1} parent=1 // pred_check
      _
    $region63: #{gan_loss_fn.1} parent=1 // pred_check_branch
      %2334 = sbr.rel (0) target = $region65
    $region64: #{gan_loss_fn.1} parent=1 // pred_region
      %s2336 = ssub.s32 16, 16
      %2337 = vsyncadd [#allocation4], %s2336
      %2340 = dma.smem_to_hbm [#allocation6], 16, %s14, [#allocation4]
    $region65: #{gan_loss_fn.1} parent=1 // pred_fallthru
      _
    // Predicated region
    $region66: #{gan_loss_fn.1} parent=1 // pred_check
      _
    $region67: #{gan_loss_fn.1} parent=1 // pred_check_branch
      %2342 = sbr.rel (0) target = $region69
    $region68: #{gan_loss_fn.1} parent=1 // pred_region
      %s2344 = ssub.s32 16, 16
      %2345 = vsyncadd [#allocation8], %s2344
      %2348 = dma.smem_to_hbm [#allocation7], 16, %s15, [#allocation8]
    $region69: #{gan_loss_fn.1} parent=1 // pred_fallthru
      _
    // Predicated region
    $region70: #{gan_loss_fn.1} parent=1 // pred_check
      _
    $region71: #{gan_loss_fn.1} parent=1 // pred_check_branch
      %2350 = sbr.rel (0) target = $region73
    $region72: #{gan_loss_fn.1} parent=1 // pred_region
      %s2352 = ssub.s32 16, 16
      %2353 = vsyncadd [#allocation8], %s2352
      %2356 = dma.smem_to_hbm [#allocation9], 16, %s16, [#allocation8]
    $region73: #{gan_loss_fn.1} parent=1 // pred_fallthru
      _
    // Predicated region
    $region74: #{gan_loss_fn.1} parent=1 // pred_check
      _
    $region75: #{gan_loss_fn.1} parent=1 // pred_check_branch
      %2358 = sbr.rel (0) target = $region77
    $region76: #{gan_loss_fn.1} parent=1 // pred_region
      %2359 = dma.done [#allocation4], 16
    $region77: #{gan_loss_fn.1} parent=1 // pred_fallthru
      _
    // Predicated region
    $region78: #{gan_loss_fn.1} parent=1 // pred_check
      _
    $region79: #{gan_loss_fn.1} parent=1 // pred_check_branch
      %2361 = sbr.rel (0) target = $region81
    $region80: #{gan_loss_fn.1} parent=1 // pred_region
      %2362 = dma.done [#allocation8], 16
    $region81: #{gan_loss_fn.1} parent=1 // pred_fallthru
      _
    // Predicated region
    $region82: #{gan_loss_fn.1} parent=1 // pred_check
      _
    $region83: #{gan_loss_fn.1} parent=1 // pred_check_branch
      %2364 = sbr.rel (0) target = $region85
    $region84: #{gan_loss_fn.1} parent=1 // pred_region
      %2365 = dma.done [#allocation8], 16
    $region85: #{gan_loss_fn.1} parent=1 // pred_fallthru
      _
    %2366 = sfence
    %2367 = vsyncpa [#allocation4], 1
    %2368 = vsyncpa [#allocation8], 1
    %2369 = vsyncpa [#allocation5], 1

</llo_original>
